<compile_context>
chip_gen: v7x
topology: tpu7x:2x2x1
jax: 0.10.0
libtpu: 0.0.40
codegen_flags: <defaults>
</compile_context>

<pallas_src>
import functools

import jax
import jax.numpy as jnp
from jax import lax
from jax.experimental import pallas as pl
from jax.experimental.pallas import tpu as pltpu


def gcn_kernel(col_ids_ref, counts_ref,            # scalar prefetch (SMEM)
               a_ref, x_ref, w_ref, b_ref,         # inputs (VMEM tiles)
               o_ref,                              # output tile
               acc_ref, deg_ref,                   # scratch
               *, k_cap):
    i = pl.program_id(0)          # dst row-block
    s = pl.program_id(1)          # index into this row-block's nonzero col-block list

    @pl.when(s == 0)
    def _init():
        acc_ref[...] = jnp.zeros_like(acc_ref)
        deg_ref[...] = jnp.zeros_like(deg_ref)

    # Only the first counts[i] steps carry real (nonzero) adjacency tiles; the
    # padded tail re-points at the last resident tile (no new DMA) and is skipped.
    @pl.when(s < counts_ref[i])
    def _accumulate():
        a_f32 = a_ref[...].astype(jnp.float32)     # int8 0/1 -> f32 (exact)
        a_bf = a_f32.astype(jnp.bfloat16)          # exact for 0/1
        # x_ref already carries norm_src folded in (done once in the wrapper).
        acc_ref[...] += jnp.dot(a_bf, x_ref[...],
                                preferred_element_type=jnp.float32)
        # fused dst in-degree: XLU row-sum rides under the MXU
        deg_ref[...] += jnp.sum(a_f32, axis=1, keepdims=True)

    @pl.when(s == pl.num_programs(1) - 1)
    def _finalize():
        deg = jnp.minimum(jnp.maximum(deg_ref[...], 1.0), k_cap)
        norm_dst = lax.rsqrt(deg)                                   # (tm, 1)
        rst = jnp.dot(acc_ref[...].astype(jnp.bfloat16), w_ref[...],
                      preferred_element_type=jnp.float32)           # (tm, D)
        o_ref[...] = (rst * norm_dst + b_ref[...]).astype(o_ref.dtype)


def gcn_prepare_graph(adj, *, tm=512, tk=1024):
    """One-off per-graph preprocessing (single logical pass over A).

    Cache the returned dict and reuse it across layers / training steps:
    it holds the int8 adjacency, src-degree norm, and the compacted
    nonzero-column-block schedule used for tile skipping.
    Pick tk (and tm) aligned with A's empty-block granularity if you want the
    sparsity skip to actually skip anything.
    """
    N_dst, N_src = adj.shape
    tm = min(tm, N_dst)
    tk = min(tk, N_src)
    # v7x has 2 TensorCores per chip: keep >= 2 parallel dst row-blocks if possible.
    if N_dst // tm < 2 and (tm // 2) % 32 == 0 and N_dst % (tm // 2) == 0:
        tm //= 2
    if N_dst % tm or N_src % tk:
        raise ValueError("N_dst / N_src must be multiples of tm / tk (pad the graph).")
    num_i, num_k = N_dst // tm, N_src // tk

    adj_f32 = adj.astype(jnp.float32)

    # src-side degree norm (dst-side degree is fused in-kernel)
    out_degs = jnp.maximum(jnp.sum(adj_f32, axis=0), 1.0)            # clamp(min=1)
    norm_src = lax.rsqrt(out_degs).reshape(N_src, 1)                 # (N_src, 1) f32

    # sparsity structure: compacted nonzero column-block ids per row-block
    tile_nnz = (adj_f32.reshape(num_i, tm, num_k, tk) != 0).any(axis=(1, 3))
    pos = jnp.arange(num_k, dtype=jnp.int32)[None, :]
    sort_key = jnp.where(tile_nnz, pos, pos + num_k)      # nonzero blocks first, stable
    order = jnp.argsort(sort_key, axis=1).astype(jnp.int32)
    counts = jnp.sum(tile_nnz, axis=1).astype(jnp.int32)             # (num_i,)
    take = jnp.minimum(pos, jnp.maximum(counts - 1, 0)[:, None])
    col_ids = jnp.take_along_axis(order, take, axis=1)               # pad = repeat last
    col_ids = col_ids.reshape(-1)                 # flat 1-D: avoids 2-D SMEM padding

    # dominant HBM stream narrowed to int8 (0/1 is exact); upcast in-kernel.
    adj_i8 = adj_f32.astype(jnp.int8)

    return {
        "adj": adj_i8, "norm_src": norm_src,
        "col_ids": col_ids, "counts": counts,
        "tm": tm, "tk": tk, "num_i": num_i, "num_k": num_k,
        "N_dst": N_dst, "N_src": N_src,
    }


def gcn_forward(graph, h_src, weight, bias, k):
    """graph: dict from gcn_prepare_graph (reused across calls).
    h_src: (N_src, D).  weight: (D, D).  bias: (D,).  k: GCNLayer.k."""
    tm, tk = graph["tm"], graph["tk"]
    num_i, num_k = graph["num_i"], graph["num_k"]
    N_dst, N_src = graph["N_dst"], graph["N_src"]
    N_src_, D = h_src.shape
    assert N_src_ == N_src and weight.shape == (D, D) and bias.shape == (D,)

    # Fold norm_src into the existing bf16 feature cast (no extra stream, no
    # per-step VPU mul / cast round-trip inside the kernel).
    x_c = (h_src * graph["norm_src"]).astype(jnp.bfloat16)           # (N_src, D)
    w_c = weight.astype(jnp.bfloat16)
    b_c = bias.reshape(1, D).astype(jnp.float32)

    kernel = functools.partial(gcn_kernel, k_cap=float(k))

    return pl.pallas_call(
        kernel,
        out_shape=jax.ShapeDtypeStruct((N_dst, D), h_src.dtype),
        grid_spec=pltpu.PrefetchScalarGridSpec(
            num_scalar_prefetch=2,
            grid=(num_i, num_k),
            in_specs=[
                # adjacency tile (int8): data-dependent column block via scalar prefetch
                pl.BlockSpec((tm, tk),
                             lambda i, s, ids, cnt: (i, ids[i * num_k + s])),
                # src features (bf16, norm_src pre-folded): full feature dim per tile
                pl.BlockSpec((tk, D),
                             lambda i, s, ids, cnt: (ids[i * num_k + s], 0)),
                # weight + bias: same block every step -> fetched once, resident
                pl.BlockSpec((D, D), lambda i, s, ids, cnt: (0, 0)),
                pl.BlockSpec((1, D), lambda i, s, ids, cnt: (0, 0)),
            ],
            out_specs=pl.BlockSpec((tm, D), lambda i, s, ids, cnt: (i, 0)),
            scratch_shapes=[pltpu.VMEM((tm, D), jnp.float32),
                            pltpu.VMEM((tm, 1), jnp.float32)],
        ),
        compiler_params=pltpu.CompilerParams(
            dimension_semantics=("parallel", "arbitrary")),
    )(graph["col_ids"], graph["counts"], graph["adj"], x_c, w_c, b_c)


def gcn_reference(adj, h_src, weight, bias, k):
    out_degs = jnp.maximum(jnp.sum(adj, axis=0), 1.0)
    norm_src = lax.rsqrt(out_degs)[:, None]
    agg = adj @ (norm_src * h_src)
    rst = agg @ weight
    in_degs = jnp.maximum(jnp.sum(adj, axis=1), 1.0)
    in_degs = jnp.minimum(in_degs, float(k))
    norm_dst = lax.rsqrt(in_degs)[:, None]
    return rst * norm_dst + bias


if __name__ == "__main__":
    key = jax.random.PRNGKey(0)
    k_adj, k_feat, k_w, k_b = jax.random.split(key, 4)

    N_SRC, N_DST, D = 512, 512, 128      # bipartite graph, embed_size = 128
    K_SAMPLE = 16                        # GCNLayer.k (dst-degree cap)
    TM, TK = 256, 256                    # tiles aligned to the 256-wide empty blocks
                                         # so the sparsity skip actually skips tiles

    # ~10% dense adjacency with a checkerboard of genuinely empty 256x256
    # blocks so the tile-skipping path is exercised.
    adj = jax.random.bernoulli(k_adj, p=0.1, shape=(N_DST, N_SRC)).astype(jnp.float32)
    bi = jnp.arange(N_DST)[:, None] // 256
    bk = jnp.arange(N_SRC)[None, :] // 256
    adj = adj * (((bi + bk) % 2) == 0).astype(jnp.float32)

    h_src = jax.random.normal(k_feat, (N_SRC, D), dtype=jnp.float32)
    limit = (6.0 / (D + D)) ** 0.5       # xavier_uniform-style init
    weight = jax.random.uniform(k_w, (D, D), minval=-limit, maxval=limit,
                                dtype=jnp.float32)
    bias = 0.05 * jax.random.normal(k_b, (D,), dtype=jnp.float32)

    # Per-graph preprocessing done once; reuse across layers / steps.
    graph = gcn_prepare_graph(adj, tm=TM, tk=TK)

    out = gcn_forward(graph, h_src, weight, bias, K_SAMPLE)
    out = jax.block_until_ready(out)

    ref = gcn_reference(adj, h_src, weight, bias, K_SAMPLE)
    assert out.shape == (N_DST, D)
    assert jnp.allclose(out, ref, atol=3e-2, rtol=3e-2)

    print("KERNEL_OK")
</pallas_src>

<mosaic_0001>
module attributes {stable_mosaic.version = 11 : i64} {
  func.func @gcn_kernel(%arg0: i32, %arg1: i32, %arg2: memref<4xi32, #tpu.memory_space<smem>>, %arg3: memref<2xi32, #tpu.memory_space<smem>>, %arg4: memref<256x256xi8, #tpu.memory_space<vmem>>, %arg5: memref<256x128xbf16, #tpu.memory_space<vmem>>, %arg6: memref<128x128xbf16, #tpu.memory_space<vmem>>, %arg7: memref<1x128xf32, #tpu.memory_space<vmem>>, %arg8: memref<256x128xf32, #tpu.memory_space<vmem>>, %arg9: memref<256x128xf32, #tpu.memory_space<vmem>>, %arg10: memref<256x1xf32, #tpu.memory_space<vmem>>) attributes {dimension_semantics = [#tpu.dimension_semantics<parallel>, #tpu.dimension_semantics<arbitrary>], iteration_bounds = array<i64: 2, 2>, scalar_prefetch = 2 : i64, scratch_operands = 2 : i64, tpu.core_type = #tpu.core_type<tc>, window_params = [{transform_indices = @transform_0, window_bounds = array<i64: 256, 256>}, {transform_indices = @transform_1, window_bounds = array<i64: 256, 128>}, {pipeline_mode = #tpu.pipeline_mode<synchronous>, transform_indices = @transform_2, window_bounds = array<i64: 128, 128>}, {pipeline_mode = #tpu.pipeline_mode<synchronous>, transform_indices = @transform_3, window_bounds = array<i64: 1, 128>}, {transform_indices = @transform_4, window_bounds = array<i64: 256, 128>}]} {
    %c0_i32 = arith.constant 0 : i32
    %0 = arith.cmpi eq, %arg1, %c0_i32 : i32
    %1 = arith.extui %0 : i1 to i32
    %c0_i32_0 = arith.constant 0 : i32
    %2 = arith.cmpi ne, %1, %c0_i32_0 : i32
    scf.if %2 {
      %cst = arith.constant 0.000000e+00 : f32
      %11 = vector.broadcast %cst : f32 to vector<256x128xf32>
      %c0 = arith.constant 0 : index
      %c0_3 = arith.constant 0 : index
      %12 = vector.load %arg9[%c0, %c0_3] : memref<256x128xf32, #tpu.memory_space<vmem>>, vector<256x128xf32>
      tpu.vector_store %arg9[%c0, %c0_3], %11 {strides = array<i32>} : memref<256x128xf32, #tpu.memory_space<vmem>>, vector<256x128xf32>,
      %cst_4 = arith.constant 0.000000e+00 : f32
      %13 = vector.broadcast %cst_4 : f32 to vector<256x1xf32>
      %c0_5 = arith.constant 0 : index
      %c0_6 = arith.constant 0 : index
      %14 = vector.load %arg10[%c0_5, %c0_6] : memref<256x1xf32, #tpu.memory_space<vmem>>, vector<256x1xf32>
      tpu.vector_store %arg10[%c0_5, %c0_6], %13 {strides = array<i32>} : memref<256x1xf32, #tpu.memory_space<vmem>>, vector<256x1xf32>,
    } else {
    }
    %3 = arith.index_cast %arg0 : i32 to index
    %4 = memref.load %arg3[%3] : memref<2xi32, #tpu.memory_space<smem>>
    %5 = arith.cmpi slt, %arg1, %4 : i32
    %6 = arith.extui %5 : i1 to i32
    %c0_i32_1 = arith.constant 0 : i32
    %7 = arith.cmpi ne, %6, %c0_i32_1 : i32
    scf.if %7 {
      %c0 = arith.constant 0 : index
      %c0_3 = arith.constant 0 : index
      %11 = vector.load %arg4[%c0, %c0_3] : memref<256x256xi8, #tpu.memory_space<vmem>>, vector<256x256xi8>
      %12 = arith.sitofp %11 : vector<256x256xi8> to vector<256x256xf32>
      %13 = arith.truncf %12 : vector<256x256xf32> to vector<256x256xbf16>
      %c0_4 = arith.constant 0 : index
      %c0_5 = arith.constant 0 : index
      %14 = vector.load %arg9[%c0_4, %c0_5] : memref<256x128xf32, #tpu.memory_space<vmem>>, vector<256x128xf32>
      %c0_6 = arith.constant 0 : index
      %c0_7 = arith.constant 0 : index
      %15 = vector.load %arg5[%c0_6, %c0_7] : memref<256x128xbf16, #tpu.memory_space<vmem>>, vector<256x128xbf16>
      %cst = arith.constant dense<0.000000e+00> : vector<256x128xf32>
      %16 = tpu.matmul %13, %15, %cst {dimension_numbers = #tpu.dot_dimension_numbers<[1], [0], [0], [1], [0, 0, 1, 1], [], []>} : vector<256x256xbf16>, vector<256x128xbf16>, vector<256x128xf32> -> vector<256x128xf32>
      %17 = arith.addf %14, %16 : vector<256x128xf32>
      %c0_8 = arith.constant 0 : index
      %c0_9 = arith.constant 0 : index
      %18 = vector.load %arg9[%c0_8, %c0_9] : memref<256x128xf32, #tpu.memory_space<vmem>>, vector<256x128xf32>
      tpu.vector_store %arg9[%c0_8, %c0_9], %17 {strides = array<i32>} : memref<256x128xf32, #tpu.memory_space<vmem>>, vector<256x128xf32>,
      %c0_10 = arith.constant 0 : index
      %c0_11 = arith.constant 0 : index
      %19 = vector.load %arg10[%c0_10, %c0_11] : memref<256x1xf32, #tpu.memory_space<vmem>>, vector<256x1xf32>
      %cst_12 = arith.constant dense<0.000000e+00> : vector<256xf32>
      %20 = vector.multi_reduction <add>, %12, %cst_12 [1] : vector<256x256xf32> to vector<256xf32>
      %21 = vector.shape_cast %20 : vector<256xf32> to vector<256x1xf32>
      %22 = arith.addf %19, %21 : vector<256x1xf32>
      %c0_13 = arith.constant 0 : index
      %c0_14 = arith.constant 0 : index
      %23 = vector.load %arg10[%c0_13, %c0_14] : memref<256x1xf32, #tpu.memory_space<vmem>>, vector<256x1xf32>
      tpu.vector_store %arg10[%c0_13, %c0_14], %22 {strides = array<i32>} : memref<256x1xf32, #tpu.memory_space<vmem>>, vector<256x1xf32>,
    } else {
    }
    %c1_i32 = arith.constant 1 : i32
    %8 = arith.cmpi eq, %arg1, %c1_i32 : i32
    %9 = arith.extui %8 : i1 to i32
    %c0_i32_2 = arith.constant 0 : i32
    %10 = arith.cmpi ne, %9, %c0_i32_2 : i32
    scf.if %10 {
      %c0 = arith.constant 0 : index
      %c0_3 = arith.constant 0 : index
      %11 = vector.load %arg10[%c0, %c0_3] : memref<256x1xf32, #tpu.memory_space<vmem>>, vector<256x1xf32>
      %cst = arith.constant 1.000000e+00 : f32
      %12 = vector.broadcast %cst : f32 to vector<256x1xf32>
      %13 = arith.maximumf %11, %12 : vector<256x1xf32>
      %cst_4 = arith.constant 1.600000e+01 : f32
      %14 = vector.broadcast %cst_4 : f32 to vector<256x1xf32>
      %15 = arith.minimumf %13, %14 : vector<256x1xf32>
      %16 = math.rsqrt %15 : vector<256x1xf32>
      %c0_5 = arith.constant 0 : index
      %c0_6 = arith.constant 0 : index
      %17 = vector.load %arg9[%c0_5, %c0_6] : memref<256x128xf32, #tpu.memory_space<vmem>>, vector<256x128xf32>
      %18 = arith.truncf %17 : vector<256x128xf32> to vector<256x128xbf16>
      %c0_7 = arith.constant 0 : index
      %c0_8 = arith.constant 0 : index
      %19 = vector.load %arg6[%c0_7, %c0_8] : memref<128x128xbf16, #tpu.memory_space<vmem>>, vector<128x128xbf16>
      %cst_9 = arith.constant dense<0.000000e+00> : vector<256x128xf32>
      %20 = tpu.matmul %18, %19, %cst_9 {dimension_numbers = #tpu.dot_dimension_numbers<[1], [0], [0], [1], [0, 0, 1, 1], [], []>} : vector<256x128xbf16>, vector<128x128xbf16>, vector<256x128xf32> -> vector<256x128xf32>
      %21 = vector.broadcast %16 : vector<256x1xf32> to vector<256x128xf32>
      %22 = arith.mulf %20, %21 : vector<256x128xf32>
      %c0_10 = arith.constant 0 : index
      %c0_11 = arith.constant 0 : index
      %23 = vector.load %arg7[%c0_10, %c0_11] : memref<1x128xf32, #tpu.memory_space<vmem>>, vector<1x128xf32>
      %24 = vector.broadcast %23 : vector<1x128xf32> to vector<256x128xf32>
      %25 = arith.addf %22, %24 : vector<256x128xf32>
      %c0_12 = arith.constant 0 : index
      %c0_13 = arith.constant 0 : index
      %26 = vector.load %arg8[%c0_12, %c0_13] : memref<256x128xf32, #tpu.memory_space<vmem>>, vector<256x128xf32>
      tpu.vector_store %arg8[%c0_12, %c0_13], %25 {strides = array<i32>} : memref<256x128xf32, #tpu.memory_space<vmem>>, vector<256x128xf32>,
    } else {
    }
    return
  }
  func.func @transform_0(%arg0: i32, %arg1: i32, %arg2: memref<4xi32, #tpu.memory_space<smem>>, %arg3: memref<2xi32, #tpu.memory_space<smem>>) -> (i32, i32) {
    %c2_i32 = arith.constant 2 : i32
    %0 = arith.muli %arg0, %c2_i32 : i32
    %1 = arith.addi %0, %arg1 : i32
    %2 = arith.index_cast %1 : i32 to index
    %3 = memref.load %arg2[%2] : memref<4xi32, #tpu.memory_space<smem>>
    %c0_i32 = arith.constant 0 : i32
    return %arg0, %3 : i32, i32
  }
  func.func @transform_1(%arg0: i32, %arg1: i32, %arg2: memref<4xi32, #tpu.memory_space<smem>>, %arg3: memref<2xi32, #tpu.memory_space<smem>>) -> (i32, i32) {
    %c2_i32 = arith.constant 2 : i32
    %0 = arith.muli %arg0, %c2_i32 : i32
    %1 = arith.addi %0, %arg1 : i32
    %2 = arith.index_cast %1 : i32 to index
    %3 = memref.load %arg2[%2] : memref<4xi32, #tpu.memory_space<smem>>
    %c0_i32 = arith.constant 0 : i32
    %c0_i32_0 = arith.constant 0 : i32
    return %3, %c0_i32 : i32, i32
  }
  func.func @transform_2(%arg0: i32, %arg1: i32, %arg2: memref<4xi32, #tpu.memory_space<smem>>, %arg3: memref<2xi32, #tpu.memory_space<smem>>) -> (i32, i32) {
    %c0_i32 = arith.constant 0 : i32
    %c0_i32_0 = arith.constant 0 : i32
    %c0_i32_1 = arith.constant 0 : i32
    return %c0_i32, %c0_i32_0 : i32, i32
  }
  func.func @transform_3(%arg0: i32, %arg1: i32, %arg2: memref<4xi32, #tpu.memory_space<smem>>, %arg3: memref<2xi32, #tpu.memory_space<smem>>) -> (i32, i32) {
    %c0_i32 = arith.constant 0 : i32
    %c0_i32_0 = arith.constant 0 : i32
    %c0_i32_1 = arith.constant 0 : i32
    return %c0_i32, %c0_i32_0 : i32, i32
  }
  func.func @transform_4(%arg0: i32, %arg1: i32, %arg2: memref<4xi32, #tpu.memory_space<smem>>, %arg3: memref<2xi32, #tpu.memory_space<smem>>) -> (i32, i32) {
    %c0_i32 = arith.constant 0 : i32
    %c0_i32_0 = arith.constant 0 : i32
    return %arg0, %c0_i32 : i32, i32
  }
}

</mosaic_0001>

<llo_original>
// kernel: tpu_custom_call.1
$region0: #{tpu_custom_call.1}
  #allocation0 [shape = 'u32[]', space=smem, size = 0x4, offset = 0x4, fixed_abs, tag = 'smem constant byte address 0x4 - core index']
  #allocation1 [shape = 'u32[144,128]{1,0:T(1,128)}', space=vmem, size = 0x12000, scoped, tag = 'internal scratch']
  #allocation2 [shape = 'f32[256,128]{1,0:T(8,128)}', space=vmem, size = 0x20000, scoped, tag = 'scratch operand']
  #allocation3 [shape = 'f32[256,1]{1,0:T(8,128)}', space=vmem, size = 0x20000, scoped, tag = 'scratch operand']
  #allocation4 [shape = 's32[1]{0}', space=sflag, size = 0x4, scoped, tag = 'scoped memory for tpu_custom_call.1']
  #allocation5 [shape = 'u8[512]{0}', space=smem, size = 0x200, scoped, tag = 'prefetched SMEM operand 0']
  #allocation6 [shape = 'u8[512]{0}', space=smem, size = 0x200, scoped, tag = 'prefetched SMEM operand 1']
  %s0 = inlined_call_operand.hbm [shape: s32[4], index: 0, kind: input, shape index: {}]
  %s1 = inlined_call_operand.vmem [shape: s32[2], index: 1, kind: input, shape index: {}]
  %s2 = inlined_call_operand.hbm [shape: s8[512,512], index: 2, kind: input, shape index: {}]
  %s3 = inlined_call_operand.hbm [shape: bf16[512,128], index: 3, kind: input, shape index: {}]
  %s4 = inlined_call_operand.hbm [shape: bf16[128,128], index: 4, kind: input, shape index: {}]
  %s5 = inlined_call_operand.vmem [shape: f32[1,128], index: 5, kind: input, shape index: {}]
  %s6 = inlined_call_operand.hbm [shape: f32[512,128], index: 6, kind: output, shape index: {}]
  %s7 = sld [smem:[#allocation0]]
  $region73: #{tpu_custom_call.1} parent=0
    _
  %s9 = ssub.s32 1, %s7
  %s10 = scalar_select 0, %s9, %s7
  %12 = dma.hbm_to_smem %s0, 16, [#allocation5], [#allocation4]
  %s13 = sshll.u32 %s1, 4
  %s14 = int_to_ptr.vmem [resolvable:$true] %s13
  %16 = dma.vmem_to_smem %s14, 16, [#allocation6], [#allocation4]
  %17 = dma.done [#allocation4], 32
  %18 = sfence
  $region1: #{tpu_custom_call.1} parent=0
    #allocation7 [shape = 'u8[131072]{0}', space=vmem, size = 0x20000, scoped, tag = 'input window, operand 2']
    #allocation8 [shape = 's32[2]{0}', space=sflag, size = 0x8, scoped, tag = 'scoped memory for tpu_custom_call.1']
    #allocation9 [shape = 's32[2]{0}', space=sflag, size = 0x8, scoped, tag = 'scoped memory for tpu_custom_call.1']
    #allocation10 [shape = 'u8[131072]{0}', space=vmem, size = 0x20000, scoped, tag = 'input window, operand 3']
    #allocation11 [shape = 's32[2]{0}', space=sflag, size = 0x8, scoped, tag = 'scoped memory for tpu_custom_call.1']
    #allocation12 [shape = 'u8[32768]{0}', space=vmem, size = 0x8000, scoped, tag = 'input window, operand 4, single buffered']
    #allocation13 [shape = 'u8[262144]{0}', space=vmem, size = 0x40000, scoped, tag = 'output window, operand 0']
    %19 = vsyncpa [#allocation8], 0
    %s20 = scalar_lea.sflag [#allocation8], 1
    %21 = vsyncpa %s20, 0
    %22 = vsyncpa [#allocation11], 0
    %s23 = scalar_lea.sflag [#allocation11], 1
    %24 = vsyncpa %s23, 0
    %25 = vsyncpa [#allocation9], 0
    %s26 = scalar_lea.sflag [#allocation9], 1
    %27 = vsyncpa %s26, 0
    loop: start=0, step=1, limit=6
    $region2: #{tpu_custom_call.1} parent=1 // loop_pre_header
      _
    $region3: #{tpu_custom_call.1} parent=1 // loop_header
      %s29 = sphi 0, %s33
      %p30 = scmp.ge.s32.totalorder %s29, 6
      %s36 = sphi 0, %s48
      %s37 = sphi 0, %s44
      %s38 = sphi 0, %s36
      %s39 = sphi 0, %s37
      %s40 = sphi 0, %s38
      %s41 = sphi 0, %s39
      %s59 = sphi 0, %s61
      %s62 = sphi 0, %s59
      %s63 = sphi 0, %s62
      %s79 = sphi 0, %s63
      %s91 = sphi 0, %s93
      %s94 = sphi 0, %s91
      %s95 = sphi 0, %s94
      %s111 = sphi 0, %s95
      %s115 = sphi 0, %s115
      %s117 = sphi 0, %s115
      %s118 = sphi 0, %s117
      %s132 = sphi 0, %s118
      %s136 = sphi 0, %s136
      %s138 = sphi 0, %s136
      %s139 = sphi 0, %s138
      %s153 = sphi 0, %s139
      %s159 = sphi 0, %s161
      %s162 = sphi 0, %s159
      %s163 = sphi 0, %s162
      %s179 = sphi 0, %s163
    $region4: #{tpu_custom_call.1} parent=1 // loop_header_branch
      %32 = sbr.rel (%p30) target = $region8
    $region5: #{tpu_custom_call.1} parent=1 // loop_body
      %s34 = ssub.s32 %s29, 1
      %s35 = ssub.s32 %s29, 2
      %s42 = sadd.s32 1, %s37
      %p43 = scmp.ge.s32.totalorder %s42, 2
      %s44 = scalar_select %p43, 0, %s42
      %s45 = sadd.s32 1, %s36
      %s46 = scalar_select %p43, %s45, %s36
      %p47 = scmp.ge.s32.totalorder %s46, 2
      %s48 = scalar_select %p47, 0, %s46
      %s49 = smul.u32 %s36, 2
      %s50 = sadd.s32 %s49, %s37
      %s51 = sld [smem:[#allocation5 + %s50]]
      %s52 = smul.u32 %s48, 2
      %s53 = sadd.s32 %s52, %s44
      %s54 = sld [smem:[#allocation5 + %s53]]
      %s55 = ssub.s32 %s36, %s48
      %s56 = ssub.s32 %s51, %s54
      %s57 = sor.u32 %s55, %s56
      %p58 = scmp.eq.s32.totalorder %s57, 0
      %s60 = sadd.s32 %s59, 1
      %s61 = scalar_select %p58, %s59, %s60
      %p64 = pneg %p58
      %p65 = scmp.eq.s32.totalorder %s29, 3
      %p66 = por %p64, %p65
      %p67 = scmp.ne.s32.totalorder %s59, %s62
      %p68 = scmp.eq.s32.totalorder %s29, 0
      %p69 = por %p67, %p68
      %p70 = scmp.ne.s32.totalorder %s59, %s62
      %p71 = scmp.eq.s32.totalorder %s34, 3
      %p72 = por %p70, %p71
      %p73 = scmp.ne.s32.totalorder %s62, %s63
      %p74 = scmp.eq.s32.totalorder %s34, 0
      %p75 = por %p73, %p74
      %p76 = scmp.ne.s32.totalorder %s62, %s63
      %p77 = scmp.eq.s32.totalorder %s35, 3
      %p78 = por %p76, %p77
      %p80 = scmp.ne.s32.totalorder %s63, %s79
      %p81 = scmp.eq.s32.totalorder %s35, 0
      %p82 = por %p80, %p81
      %s83 = smul.u32 %s36, 2
      %s84 = sadd.s32 %s83, %s37
      %s85 = sld [smem:[#allocation5 + %s84]]
      %s86 = smul.u32 %s48, 2
      %s87 = sadd.s32 %s86, %s44
      %s88 = sld [smem:[#allocation5 + %s87]]
      %s89 = ssub.s32 %s85, %s88
      %p90 = scmp.eq.s32.totalorder %s89, 0
      %s92 = sadd.s32 %s91, 1
      %s93 = scalar_select %p90, %s91, %s92
      %p96 = pneg %p90
      %p97 = scmp.eq.s32.totalorder %s29, 3
      %p98 = por %p96, %p97
      %p99 = scmp.ne.s32.totalorder %s91, %s94
      %p100 = scmp.eq.s32.totalorder %s29, 0
      %p101 = por %p99, %p100
      %p102 = scmp.ne.s32.totalorder %s91, %s94
      %p103 = scmp.eq.s32.totalorder %s34, 3
      %p104 = por %p102, %p103
      %p105 = scmp.ne.s32.totalorder %s94, %s95
      %p106 = scmp.eq.s32.totalorder %s34, 0
      %p107 = por %p105, %p106
      %p108 = scmp.ne.s32.totalorder %s94, %s95
      %p109 = scmp.eq.s32.totalorder %s35, 3
      %p110 = por %p108, %p109
      %p112 = scmp.ne.s32.totalorder %s95, %s111
      %p113 = scmp.eq.s32.totalorder %s35, 0
      %p114 = por %p112, %p113
      %s116 = sadd.s32 %s115, 1
      %p119 = scmp.eq.s32.totalorder %s29, 3
      %p120 = scmp.ne.s32.totalorder %s115, %s117
      %p121 = scmp.eq.s32.totalorder %s29, 0
      %p122 = por %p120, %p121
      %p123 = scmp.ne.s32.totalorder %s115, %s117
      %p124 = scmp.eq.s32.totalorder %s34, 3
      %p125 = por %p123, %p124
      %p126 = scmp.ne.s32.totalorder %s117, %s118
      %p127 = scmp.eq.s32.totalorder %s34, 0
      %p128 = por %p126, %p127
      %p129 = scmp.ne.s32.totalorder %s117, %s118
      %p130 = scmp.eq.s32.totalorder %s35, 3
      %p131 = por %p129, %p130
      %p133 = scmp.ne.s32.totalorder %s118, %s132
      %p134 = scmp.eq.s32.totalorder %s35, 0
      %p135 = por %p133, %p134
      %s137 = sadd.s32 %s136, 1
      %p140 = scmp.eq.s32.totalorder %s29, 3
      %p141 = scmp.ne.s32.totalorder %s136, %s138
      %p142 = scmp.eq.s32.totalorder %s29, 0
      %p143 = por %p141, %p142
      %p144 = scmp.ne.s32.totalorder %s136, %s138
      %p145 = scmp.eq.s32.totalorder %s34, 3
      %p146 = por %p144, %p145
      %p147 = scmp.ne.s32.totalorder %s138, %s139
      %p148 = scmp.eq.s32.totalorder %s34, 0
      %p149 = por %p147, %p148
      %p150 = scmp.ne.s32.totalorder %s138, %s139
      %p151 = scmp.eq.s32.totalorder %s35, 3
      %p152 = por %p150, %p151
      %p154 = scmp.ne.s32.totalorder %s139, %s153
      %p155 = scmp.eq.s32.totalorder %s35, 0
      %p156 = por %p154, %p155
      %s157 = ssub.s32 %s36, %s48
      %p158 = scmp.eq.s32.totalorder %s157, 0
      %s160 = sadd.s32 %s159, 1
      %s161 = scalar_select %p158, %s159, %s160
      %p164 = pneg %p158
      %p165 = scmp.eq.s32.totalorder %s29, 3
      %p166 = por %p164, %p165
      %p167 = scmp.ne.s32.totalorder %s159, %s162
      %p168 = scmp.eq.s32.totalorder %s29, 0
      %p169 = por %p167, %p168
      %p170 = scmp.ne.s32.totalorder %s159, %s162
      %p171 = scmp.eq.s32.totalorder %s34, 3
      %p172 = por %p170, %p171
      %p173 = scmp.ne.s32.totalorder %s162, %s163
      %p174 = scmp.eq.s32.totalorder %s34, 0
      %p175 = por %p173, %p174
      %p176 = scmp.ne.s32.totalorder %s162, %s163
      %p177 = scmp.eq.s32.totalorder %s35, 3
      %p178 = por %p176, %p177
      %p180 = scmp.ne.s32.totalorder %s163, %s179
      %p181 = scmp.eq.s32.totalorder %s35, 0
      %p182 = por %p180, %p181
      %p183 = scmp.le.s32.totalorder 1, %s29
      %p184 = scmp.lt.s32.totalorder %s29, 5
      %p185 = pnand %p183, %p184
      %p186 = pneg %p185
      // Predicated region
      $region9: #{tpu_custom_call.1} parent=5 // pred_check
        _
      $region10: #{tpu_custom_call.1} parent=5 // pred_check_branch
        %188 = sbr.rel (%p185) target = $region12
      $region11: #{tpu_custom_call.1} parent=5 // pred_region
        %s189 = ssub.s32 %s29, 1
        // Predicated region
        $region13: #{tpu_custom_call.1} parent=11 // pred_check
          %p190 = pneg %p128
        $region14: #{tpu_custom_call.1} parent=11 // pred_check_branch
          %192 = sbr.rel (%p190) target = $region16
        $region15: #{tpu_custom_call.1} parent=11 // pred_region
          %s194 = ssub.s32 1024, 1024
          %195 = vsyncadd [#allocation11], %s194
          %s196 = sshll.u32 [#allocation12], 4
          %s197 = int_to_ptr.vmem [resolvable:$true] %s196
          %202 = dma.hbm_to_vmem [thread:$0]  %s4, 1024, %s197, [#allocation11], 64, 64, 4
        $region16: #{tpu_custom_call.1} parent=11 // pred_fallthru
          _
        // Predicated region
        $region17: #{tpu_custom_call.1} parent=11 // pred_check
          %p203 = pneg %p149
        $region18: #{tpu_custom_call.1} parent=11 // pred_check_branch
          %205 = sbr.rel (%p203) target = $region20
        $region19: #{tpu_custom_call.1} parent=11 // pred_region
          _
        $region20: #{tpu_custom_call.1} parent=11 // pred_fallthru
          _
      $region12: #{tpu_custom_call.1} parent=5 // pred_fallthru
        _
      %p206 = scmp.lt.s32.totalorder %s29, 4
      // Predicated region
      $region21: #{tpu_custom_call.1} parent=5 // pred_check
        %p207 = pneg %p206
      $region22: #{tpu_custom_call.1} parent=5 // pred_check_branch
        %209 = sbr.rel (%p207) target = $region24
      $region23: #{tpu_custom_call.1} parent=5 // pred_region
        // Predicated region
        $region25: #{tpu_custom_call.1} parent=23 // pred_check
          %p210 = pneg %p69
        $region26: #{tpu_custom_call.1} parent=23 // pred_check_branch
          %212 = sbr.rel (%p210) target = $region28
        $region27: #{tpu_custom_call.1} parent=23 // pred_region
          %s213 = sand.u32 %s59, 1
          %s214 = scalar_lea.sflag [#allocation8], %s213
          %s215 = sand.u32 %s59, 1
          %s216 = smul.addr %s215, 128
          %s217 = scalar_lea.vmem [#allocation7], %s216
          %s218 = smul.u32 %s36, 2
          %s219 = sadd.s32 %s218, %s37
          %s220 = sld [smem:[#allocation5 + %s219]]
          %s221 = smul.u32 8, %s36
          %s222 = smul.u32 2, %s220
          %s224 = ssub.s32 2048, 2048
          %225 = vsyncadd %s214, %s224
          %s226 = smul.addr %s221, 4
          %s227 = sadd.s32 %s222, %s226
          %s228 = smul.addr %s227, 128
          %s229 = scalar_lea.hbm %s2, %s228
          %s230 = sshll.u32 %s217, 4
          %s231 = int_to_ptr.vmem [resolvable:$true] %s230
          %236 = dma.hbm_to_vmem [thread:$0]  %s229, 2048, %s231, %s214, 512, 256, 16
        $region28: #{tpu_custom_call.1} parent=23 // pred_fallthru
          _
        // Predicated region
        $region29: #{tpu_custom_call.1} parent=23 // pred_check
          %p237 = pneg %p101
        $region30: #{tpu_custom_call.1} parent=23 // pred_check_branch
          %239 = sbr.rel (%p237) target = $region32
        $region31: #{tpu_custom_call.1} parent=23 // pred_region
          %s240 = sand.u32 %s29, 1
          %s241 = scalar_lea.sflag [#allocation11], %s240
          %s242 = sand.u32 %s91, 1
          %s243 = smul.addr %s242, 128
          %s244 = scalar_lea.vmem [#allocation10], %s243
          %s245 = smul.u32 %s36, 2
          %s246 = sadd.s32 %s245, %s37
          %s247 = sld [smem:[#allocation5 + %s246]]
          %s248 = smul.u32 32, %s247
          %s250 = ssub.s32 2048, 2048
          %251 = vsyncadd %s241, %s250
          %s252 = smul.addr %s248, 64
          %s253 = scalar_lea.hbm %s3, %s252
          %s254 = sshll.u32 %s244, 4
          %s255 = int_to_ptr.vmem [resolvable:$true] %s254
          %260 = dma.hbm_to_vmem [thread:$0]  %s253, 2048, %s255, %s241, 64, 64, 4
        $region32: #{tpu_custom_call.1} parent=23 // pred_fallthru
          _
      $region24: #{tpu_custom_call.1} parent=5 // pred_fallthru
        _
      %p261 = scmp.le.s32.totalorder 1, %s29
      %p262 = scmp.lt.s32.totalorder %s29, 5
      %p263 = pnand %p261, %p262
      %p264 = pneg %p263
      // Predicated region
      $region33: #{tpu_custom_call.1} parent=5 // pred_check
        _
      $region34: #{tpu_custom_call.1} parent=5 // pred_check_branch
        %266 = sbr.rel (%p263) target = $region36
      $region35: #{tpu_custom_call.1} parent=5 // pred_region
        %s267 = ssub.s32 %s29, 1
        %s268 = sand.u32 %s62, 1
        %s269 = scalar_lea.sflag [#allocation8], %s268
        %s270 = sand.u32 %s62, 1
        %s271 = smul.addr %s270, 128
        %s272 = scalar_lea.vmem [#allocation7], %s271
        // Predicated region
        $region37: #{tpu_custom_call.1} parent=35 // pred_check
          %p273 = pneg %p75
        $region38: #{tpu_custom_call.1} parent=35 // pred_check_branch
          %275 = sbr.rel (%p273) target = $region40
        $region39: #{tpu_custom_call.1} parent=35 // pred_region
          %276 = dma.done %s269, 2048
        $region40: #{tpu_custom_call.1} parent=35 // pred_fallthru
          _
        %s277 = sand.u32 %s34, 1
        %s278 = scalar_lea.sflag [#allocation11], %s277
        %s279 = sand.u32 %s94, 1
        %s280 = smul.addr %s279, 128
        %s281 = scalar_lea.vmem [#allocation10], %s280
        // Predicated region
        $region41: #{tpu_custom_call.1} parent=35 // pred_check
          %p282 = pneg %p107
        $region42: #{tpu_custom_call.1} parent=35 // pred_check_branch
          %284 = sbr.rel (%p282) target = $region44
        $region43: #{tpu_custom_call.1} parent=35 // pred_region
          %285 = dma.done %s278, 2048
        $region44: #{tpu_custom_call.1} parent=35 // pred_fallthru
          _
        // Predicated region
        $region45: #{tpu_custom_call.1} parent=35 // pred_check
          %p286 = pneg %p128
        $region46: #{tpu_custom_call.1} parent=35 // pred_check_branch
          %288 = sbr.rel (%p286) target = $region48
        $region47: #{tpu_custom_call.1} parent=35 // pred_region
          %289 = dma.done [#allocation11], 1024
        $region48: #{tpu_custom_call.1} parent=35 // pred_fallthru
          _
        %s290 = sand.u32 %s62, 1
        %s291 = scalar_lea.sflag [#allocation8], %s290
        %s292 = sand.u32 %s62, 1
        %s293 = smul.addr %s292, 128
        %s294 = scalar_lea.vmem [#allocation7], %s293
        %p295 = pneg %p75
        %p296 = pneg %p72
        %s297 = sand.u32 %s34, 1
        %s298 = scalar_lea.sflag [#allocation11], %s297
        %s299 = sand.u32 %s94, 1
        %s300 = smul.addr %s299, 128
        %s301 = scalar_lea.vmem [#allocation10], %s300
        %p302 = pneg %p107
        %p303 = pneg %p104
        %p304 = pneg %p128
        %p305 = pneg %p125
        %p306 = pneg %p149
        %p307 = pneg %p146
        %p308 = pneg %p175
        %p309 = pneg %p172
        %s310 = sand.u32 %s162, 1
        %s311 = scalar_lea.sflag [#allocation9], %s310
        %s312 = sand.u32 %s162, 1
        %s313 = smul.addr %s312, 256
        %s314 = scalar_lea.vmem [#allocation13], %s313
        %s315 = smul.u32 %s38, 2
        %s316 = sadd.s32 %s315, %s39
        %s317 = sld [smem:[#allocation5 + %s316]]
        %s318 = smul.u32 8, %s38
        %s319 = smul.u32 2, %s317
        %s320 = smul.u32 %s38, 2
        %s321 = sadd.s32 %s320, %s39
        %s322 = sld [smem:[#allocation5 + %s321]]
        %s323 = smul.u32 32, %s322
        %s324 = smul.u32 32, %s38
        %p326 = scmp.eq.s32.totalorder %s39, 0
        // Predicated region
        $region49: #{tpu_custom_call.1} parent=35 // pred_check
          %p327 = pneg %p326
        $region50: #{tpu_custom_call.1} parent=35 // pred_check_branch
          %329 = sbr.rel (%p327) target = $region52
        $region51: #{tpu_custom_call.1} parent=35 // pred_region
          %330 = vst [vmem:[#allocation2] sm:$0xff] 0.0
          %331 = vst [vmem:[#allocation2 + $0x8] sm:$0xff] 0.0
          %332 = vst [vmem:[#allocation2 + $0x10] sm:$0xff] 0.0
          %333 = vst [vmem:[#allocation2 + $0x18] sm:$0xff] 0.0
          %334 = vst [vmem:[#allocation2 + $0x20] sm:$0xff] 0.0
          %335 = vst [vmem:[#allocation2 + $0x28] sm:$0xff] 0.0
          %336 = vst [vmem:[#allocation2 + $0x30] sm:$0xff] 0.0
          %337 = vst [vmem:[#allocation2 + $0x38] sm:$0xff] 0.0
          %338 = vst [vmem:[#allocation2 + $0x40] sm:$0xff] 0.0
          %339 = vst [vmem:[#allocation2 + $0x48] sm:$0xff] 0.0
          %340 = vst [vmem:[#allocation2 + $0x50] sm:$0xff] 0.0
          %341 = vst [vmem:[#allocation2 + $0x58] sm:$0xff] 0.0
          %342 = vst [vmem:[#allocation2 + $0x60] sm:$0xff] 0.0
          %343 = vst [vmem:[#allocation2 + $0x68] sm:$0xff] 0.0
          %344 = vst [vmem:[#allocation2 + $0x70] sm:$0xff] 0.0
          %345 = vst [vmem:[#allocation2 + $0x78] sm:$0xff] 0.0
          %346 = vst [vmem:[#allocation2 + $0x80] sm:$0xff] 0.0
          %347 = vst [vmem:[#allocation2 + $0x88] sm:$0xff] 0.0
          %348 = vst [vmem:[#allocation2 + $0x90] sm:$0xff] 0.0
          %349 = vst [vmem:[#allocation2 + $0x98] sm:$0xff] 0.0
          %350 = vst [vmem:[#allocation2 + $0xa0] sm:$0xff] 0.0
          %351 = vst [vmem:[#allocation2 + $0xa8] sm:$0xff] 0.0
          %352 = vst [vmem:[#allocation2 + $0xb0] sm:$0xff] 0.0
          %353 = vst [vmem:[#allocation2 + $0xb8] sm:$0xff] 0.0
          %354 = vst [vmem:[#allocation2 + $0xc0] sm:$0xff] 0.0
          %355 = vst [vmem:[#allocation2 + $0xc8] sm:$0xff] 0.0
          %356 = vst [vmem:[#allocation2 + $0xd0] sm:$0xff] 0.0
          %357 = vst [vmem:[#allocation2 + $0xd8] sm:$0xff] 0.0
          %358 = vst [vmem:[#allocation2 + $0xe0] sm:$0xff] 0.0
          %359 = vst [vmem:[#allocation2 + $0xe8] sm:$0xff] 0.0
          %360 = vst [vmem:[#allocation2 + $0xf0] sm:$0xff] 0.0
          %361 = vst [vmem:[#allocation2 + $0xf8] sm:$0xff] 0.0
          %vm362 = vcmask 7168
          %363 = vst.msk [vmem:[#allocation3] sm:$0xff] %vm362, 0.0
          %364 = vst.msk [vmem:[#allocation3 + $0x8] sm:$0xff] %vm362, 0.0
          %365 = vst.msk [vmem:[#allocation3 + $0x10] sm:$0xff] %vm362, 0.0
          %366 = vst.msk [vmem:[#allocation3 + $0x18] sm:$0xff] %vm362, 0.0
          %367 = vst.msk [vmem:[#allocation3 + $0x20] sm:$0xff] %vm362, 0.0
          %368 = vst.msk [vmem:[#allocation3 + $0x28] sm:$0xff] %vm362, 0.0
          %369 = vst.msk [vmem:[#allocation3 + $0x30] sm:$0xff] %vm362, 0.0
          %370 = vst.msk [vmem:[#allocation3 + $0x38] sm:$0xff] %vm362, 0.0
          %371 = vst.msk [vmem:[#allocation3 + $0x40] sm:$0xff] %vm362, 0.0
          %372 = vst.msk [vmem:[#allocation3 + $0x48] sm:$0xff] %vm362, 0.0
          %373 = vst.msk [vmem:[#allocation3 + $0x50] sm:$0xff] %vm362, 0.0
          %374 = vst.msk [vmem:[#allocation3 + $0x58] sm:$0xff] %vm362, 0.0
          %375 = vst.msk [vmem:[#allocation3 + $0x60] sm:$0xff] %vm362, 0.0
          %376 = vst.msk [vmem:[#allocation3 + $0x68] sm:$0xff] %vm362, 0.0
          %377 = vst.msk [vmem:[#allocation3 + $0x70] sm:$0xff] %vm362, 0.0
          %378 = vst.msk [vmem:[#allocation3 + $0x78] sm:$0xff] %vm362, 0.0
          %379 = vst.msk [vmem:[#allocation3 + $0x80] sm:$0xff] %vm362, 0.0
          %380 = vst.msk [vmem:[#allocation3 + $0x88] sm:$0xff] %vm362, 0.0
          %381 = vst.msk [vmem:[#allocation3 + $0x90] sm:$0xff] %vm362, 0.0
          %382 = vst.msk [vmem:[#allocation3 + $0x98] sm:$0xff] %vm362, 0.0
          %383 = vst.msk [vmem:[#allocation3 + $0xa0] sm:$0xff] %vm362, 0.0
          %384 = vst.msk [vmem:[#allocation3 + $0xa8] sm:$0xff] %vm362, 0.0
          %385 = vst.msk [vmem:[#allocation3 + $0xb0] sm:$0xff] %vm362, 0.0
          %386 = vst.msk [vmem:[#allocation3 + $0xb8] sm:$0xff] %vm362, 0.0
          %387 = vst.msk [vmem:[#allocation3 + $0xc0] sm:$0xff] %vm362, 0.0
          %388 = vst.msk [vmem:[#allocation3 + $0xc8] sm:$0xff] %vm362, 0.0
          %389 = vst.msk [vmem:[#allocation3 + $0xd0] sm:$0xff] %vm362, 0.0
          %390 = vst.msk [vmem:[#allocation3 + $0xd8] sm:$0xff] %vm362, 0.0
          %391 = vst.msk [vmem:[#allocation3 + $0xe0] sm:$0xff] %vm362, 0.0
          %392 = vst.msk [vmem:[#allocation3 + $0xe8] sm:$0xff] %vm362, 0.0
          %393 = vst.msk [vmem:[#allocation3 + $0xf0] sm:$0xff] %vm362, 0.0
          %394 = vst.msk [vmem:[#allocation3 + $0xf8] sm:$0xff] %vm362, 0.0
        $region52: #{tpu_custom_call.1} parent=35 // pred_fallthru
          _
        %s395 = sld [smem:[#allocation6 + %s38]]
        %p396 = scmp.lt.s32.totalorder %s39, %s395
        // Predicated region
        $region53: #{tpu_custom_call.1} parent=35 // pred_check
          %p397 = pneg %p396
        $region54: #{tpu_custom_call.1} parent=35 // pred_check_branch
          %399 = sbr.rel (%p397) target = $region56
        $region55: #{tpu_custom_call.1} parent=35 // pred_region
          %v400 = vld [vmem:[%s272] sm:$0xff]
          %v401 = vld [vmem:[%s272 + $0x8] sm:$0xff]
          %v402 = vld [vmem:[%s272 + $0x10] sm:$0xff]
          %v403 = vld [vmem:[%s272 + $0x18] sm:$0xff]
          %v404 = vld [vmem:[%s272 + $0x20] sm:$0xff]
          %v405 = vld [vmem:[%s272 + $0x28] sm:$0xff]
          %v406 = vld [vmem:[%s272 + $0x30] sm:$0xff]
          %v407 = vld [vmem:[%s272 + $0x38] sm:$0xff]
          %v408 = vld [vmem:[%s272 + $0x40] sm:$0xff]
          %v409 = vld [vmem:[%s272 + $0x48] sm:$0xff]
          %v410 = vld [vmem:[%s272 + $0x50] sm:$0xff]
          %v411 = vld [vmem:[%s272 + $0x58] sm:$0xff]
          %v412 = vld [vmem:[%s272 + $0x60] sm:$0xff]
          %v413 = vld [vmem:[%s272 + $0x68] sm:$0xff]
          %v414 = vld [vmem:[%s272 + $0x70] sm:$0xff]
          %v415 = vld [vmem:[%s272 + $0x78] sm:$0xff]
          %v416 = vunpack.c.0.s8 %v400
          %v417 = vunpack.c.0.s8 %v401
          %v418 = vunpack.c.1.s8 %v400
          %v419 = vunpack.c.1.s8 %v401
          %v420 = vunpack.c.2.s8 %v400
          %v421 = vunpack.c.2.s8 %v401
          %v422 = vunpack.c.3.s8 %v400
          %v423 = vunpack.c.3.s8 %v401
          %v424 = vunpack.c.0.s8 %v402
          %v425 = vunpack.c.0.s8 %v403
          %v426 = vunpack.c.1.s8 %v402
          %v427 = vunpack.c.1.s8 %v403
          %v428 = vunpack.c.2.s8 %v402
          %v429 = vunpack.c.2.s8 %v403
          %v430 = vunpack.c.3.s8 %v402
          %v431 = vunpack.c.3.s8 %v403
          %v432 = vunpack.c.0.s8 %v404
          %v433 = vunpack.c.0.s8 %v405
          %v434 = vunpack.c.1.s8 %v404
          %v435 = vunpack.c.1.s8 %v405
          %v436 = vunpack.c.2.s8 %v404
          %v437 = vunpack.c.2.s8 %v405
          %v438 = vunpack.c.3.s8 %v404
          %v439 = vunpack.c.3.s8 %v405
          %v440 = vunpack.c.0.s8 %v406
          %v441 = vunpack.c.0.s8 %v407
          %v442 = vunpack.c.1.s8 %v406
          %v443 = vunpack.c.1.s8 %v407
          %v444 = vunpack.c.2.s8 %v406
          %v445 = vunpack.c.2.s8 %v407
          %v446 = vunpack.c.3.s8 %v406
          %v447 = vunpack.c.3.s8 %v407
          %v448 = vunpack.c.0.s8 %v408
          %v449 = vunpack.c.0.s8 %v409
          %v450 = vunpack.c.1.s8 %v408
          %v451 = vunpack.c.1.s8 %v409
          %v452 = vunpack.c.2.s8 %v408
          %v453 = vunpack.c.2.s8 %v409
          %v454 = vunpack.c.3.s8 %v408
          %v455 = vunpack.c.3.s8 %v409
          %v456 = vunpack.c.0.s8 %v410
          %v457 = vunpack.c.0.s8 %v411
          %v458 = vunpack.c.1.s8 %v410
          %v459 = vunpack.c.1.s8 %v411
          %v460 = vunpack.c.2.s8 %v410
          %v461 = vunpack.c.2.s8 %v411
          %v462 = vunpack.c.3.s8 %v410
          %v463 = vunpack.c.3.s8 %v411
          %v464 = vunpack.c.0.s8 %v412
          %v465 = vunpack.c.0.s8 %v413
          %v466 = vunpack.c.1.s8 %v412
          %v467 = vunpack.c.1.s8 %v413
          %v468 = vunpack.c.2.s8 %v412
          %v469 = vunpack.c.2.s8 %v413
          %v470 = vunpack.c.3.s8 %v412
          %v471 = vunpack.c.3.s8 %v413
          %v472 = vunpack.c.0.s8 %v414
          %v473 = vunpack.c.0.s8 %v415
          %v474 = vunpack.c.1.s8 %v414
          %v475 = vunpack.c.1.s8 %v415
          %v476 = vunpack.c.2.s8 %v414
          %v477 = vunpack.c.2.s8 %v415
          %v478 = vunpack.c.3.s8 %v414
          %v479 = vunpack.c.3.s8 %v415
          %v480 = vcvt.s32.f32 %v416
          %v481 = vcvt.s32.f32 %v417
          %v482 = vcvt.s32.f32 %v418
          %v483 = vcvt.s32.f32 %v419
          %v484 = vcvt.s32.f32 %v420
          %v485 = vcvt.s32.f32 %v421
          %v486 = vcvt.s32.f32 %v422
          %v487 = vcvt.s32.f32 %v423
          %v488 = vcvt.s32.f32 %v424
          %v489 = vcvt.s32.f32 %v425
          %v490 = vcvt.s32.f32 %v426
          %v491 = vcvt.s32.f32 %v427
          %v492 = vcvt.s32.f32 %v428
          %v493 = vcvt.s32.f32 %v429
          %v494 = vcvt.s32.f32 %v430
          %v495 = vcvt.s32.f32 %v431
          %v496 = vcvt.s32.f32 %v432
          %v497 = vcvt.s32.f32 %v433
          %v498 = vcvt.s32.f32 %v434
          %v499 = vcvt.s32.f32 %v435
          %v500 = vcvt.s32.f32 %v436
          %v501 = vcvt.s32.f32 %v437
          %v502 = vcvt.s32.f32 %v438
          %v503 = vcvt.s32.f32 %v439
          %v504 = vcvt.s32.f32 %v440
          %v505 = vcvt.s32.f32 %v441
          %v506 = vcvt.s32.f32 %v442
          %v507 = vcvt.s32.f32 %v443
          %v508 = vcvt.s32.f32 %v444
          %v509 = vcvt.s32.f32 %v445
          %v510 = vcvt.s32.f32 %v446
          %v511 = vcvt.s32.f32 %v447
          %v512 = vcvt.s32.f32 %v448
          %v513 = vcvt.s32.f32 %v449
          %v514 = vcvt.s32.f32 %v450
          %v515 = vcvt.s32.f32 %v451
          %v516 = vcvt.s32.f32 %v452
          %v517 = vcvt.s32.f32 %v453
          %v518 = vcvt.s32.f32 %v454
          %v519 = vcvt.s32.f32 %v455
          %v520 = vcvt.s32.f32 %v456
          %v521 = vcvt.s32.f32 %v457
          %v522 = vcvt.s32.f32 %v458
          %v523 = vcvt.s32.f32 %v459
          %v524 = vcvt.s32.f32 %v460
          %v525 = vcvt.s32.f32 %v461
          %v526 = vcvt.s32.f32 %v462
          %v527 = vcvt.s32.f32 %v463
          %v528 = vcvt.s32.f32 %v464
          %v529 = vcvt.s32.f32 %v465
          %v530 = vcvt.s32.f32 %v466
          %v531 = vcvt.s32.f32 %v467
          %v532 = vcvt.s32.f32 %v468
          %v533 = vcvt.s32.f32 %v469
          %v534 = vcvt.s32.f32 %v470
          %v535 = vcvt.s32.f32 %v471
          %v536 = vcvt.s32.f32 %v472
          %v537 = vcvt.s32.f32 %v473
          %v538 = vcvt.s32.f32 %v474
          %v539 = vcvt.s32.f32 %v475
          %v540 = vcvt.s32.f32 %v476
          %v541 = vcvt.s32.f32 %v477
          %v542 = vcvt.s32.f32 %v478
          %v543 = vcvt.s32.f32 %v479
          %v544 = vunpack.c.l.s8.bf16 %v400
          %v545 = vunpack.c.l.s8.bf16 %v401
          %v546 = vunpack.c.h.s8.bf16 %v400
          %v547 = vunpack.c.h.s8.bf16 %v401
          %v548 = vunpack.c.l.s8.bf16 %v402
          %v549 = vunpack.c.l.s8.bf16 %v403
          %v550 = vunpack.c.h.s8.bf16 %v402
          %v551 = vunpack.c.h.s8.bf16 %v403
          %v552 = vunpack.c.l.s8.bf16 %v404
          %v553 = vunpack.c.l.s8.bf16 %v405
          %v554 = vunpack.c.h.s8.bf16 %v404
          %v555 = vunpack.c.h.s8.bf16 %v405
          %v556 = vunpack.c.l.s8.bf16 %v406
          %v557 = vunpack.c.l.s8.bf16 %v407
          %v558 = vunpack.c.h.s8.bf16 %v406
          %v559 = vunpack.c.h.s8.bf16 %v407
          %v560 = vunpack.c.l.s8.bf16 %v408
          %v561 = vunpack.c.l.s8.bf16 %v409
          %v562 = vunpack.c.h.s8.bf16 %v408
          %v563 = vunpack.c.h.s8.bf16 %v409
          %v564 = vunpack.c.l.s8.bf16 %v410
          %v565 = vunpack.c.l.s8.bf16 %v411
          %v566 = vunpack.c.h.s8.bf16 %v410
          %v567 = vunpack.c.h.s8.bf16 %v411
          %v568 = vunpack.c.l.s8.bf16 %v412
          %v569 = vunpack.c.l.s8.bf16 %v413
          %v570 = vunpack.c.h.s8.bf16 %v412
          %v571 = vunpack.c.h.s8.bf16 %v413
          %v572 = vunpack.c.l.s8.bf16 %v414
          %v573 = vunpack.c.l.s8.bf16 %v415
          %v574 = vunpack.c.h.s8.bf16 %v414
          %v575 = vunpack.c.h.s8.bf16 %v415
          %v576 = vld [vmem:[#allocation2] sm:$0xff]
          %v577 = vld [vmem:[#allocation2 + $0x8] sm:$0xff]
          %v578 = vld [vmem:[#allocation2 + $0x10] sm:$0xff]
          %v579 = vld [vmem:[#allocation2 + $0x18] sm:$0xff]
          %v580 = vld [vmem:[#allocation2 + $0x20] sm:$0xff]
          %v581 = vld [vmem:[#allocation2 + $0x28] sm:$0xff]
          %v582 = vld [vmem:[#allocation2 + $0x30] sm:$0xff]
          %v583 = vld [vmem:[#allocation2 + $0x38] sm:$0xff]
          %v584 = vld [vmem:[#allocation2 + $0x40] sm:$0xff]
          %v585 = vld [vmem:[#allocation2 + $0x48] sm:$0xff]
          %v586 = vld [vmem:[#allocation2 + $0x50] sm:$0xff]
          %v587 = vld [vmem:[#allocation2 + $0x58] sm:$0xff]
          %v588 = vld [vmem:[#allocation2 + $0x60] sm:$0xff]
          %v589 = vld [vmem:[#allocation2 + $0x68] sm:$0xff]
          %v590 = vld [vmem:[#allocation2 + $0x70] sm:$0xff]
          %v591 = vld [vmem:[#allocation2 + $0x78] sm:$0xff]
          %v592 = vld [vmem:[#allocation2 + $0x80] sm:$0xff]
          %v593 = vld [vmem:[#allocation2 + $0x88] sm:$0xff]
          %v594 = vld [vmem:[#allocation2 + $0x90] sm:$0xff]
          %v595 = vld [vmem:[#allocation2 + $0x98] sm:$0xff]
          %v596 = vld [vmem:[#allocation2 + $0xa0] sm:$0xff]
          %v597 = vld [vmem:[#allocation2 + $0xa8] sm:$0xff]
          %v598 = vld [vmem:[#allocation2 + $0xb0] sm:$0xff]
          %v599 = vld [vmem:[#allocation2 + $0xb8] sm:$0xff]
          %v600 = vld [vmem:[#allocation2 + $0xc0] sm:$0xff]
          %v601 = vld [vmem:[#allocation2 + $0xc8] sm:$0xff]
          %v602 = vld [vmem:[#allocation2 + $0xd0] sm:$0xff]
          %v603 = vld [vmem:[#allocation2 + $0xd8] sm:$0xff]
          %v604 = vld [vmem:[#allocation2 + $0xe0] sm:$0xff]
          %v605 = vld [vmem:[#allocation2 + $0xe8] sm:$0xff]
          %v606 = vld [vmem:[#allocation2 + $0xf0] sm:$0xff]
          %v607 = vld [vmem:[#allocation2 + $0xf8] sm:$0xff]
          %v608 = vld [vmem:[%s281] sm:$0xf]
          %v609 = vld [vmem:[%s281 + $0x4] sm:$0xf]
          %v610 = vld [vmem:[%s281 + $0x8] sm:$0xf]
          %v611 = vld [vmem:[%s281 + $0xc] sm:$0xf]
          %v612 = vld [vmem:[%s281 + $0x10] sm:$0xf]
          %v613 = vld [vmem:[%s281 + $0x14] sm:$0xf]
          %v614 = vld [vmem:[%s281 + $0x18] sm:$0xf]
          %v615 = vld [vmem:[%s281 + $0x1c] sm:$0xf]
          %v616 = vld [vmem:[%s281 + $0x20] sm:$0xf]
          %v617 = vld [vmem:[%s281 + $0x24] sm:$0xf]
          %v618 = vld [vmem:[%s281 + $0x28] sm:$0xf]
          %v619 = vld [vmem:[%s281 + $0x2c] sm:$0xf]
          %v620 = vld [vmem:[%s281 + $0x30] sm:$0xf]
          %v621 = vld [vmem:[%s281 + $0x34] sm:$0xf]
          %v622 = vld [vmem:[%s281 + $0x38] sm:$0xf]
          %v623 = vld [vmem:[%s281 + $0x3c] sm:$0xf]
          %v624 = vld [vmem:[%s281 + $0x40] sm:$0xf]
          %v625 = vld [vmem:[%s281 + $0x44] sm:$0xf]
          %v626 = vld [vmem:[%s281 + $0x48] sm:$0xf]
          %v627 = vld [vmem:[%s281 + $0x4c] sm:$0xf]
          %v628 = vld [vmem:[%s281 + $0x50] sm:$0xf]
          %v629 = vld [vmem:[%s281 + $0x54] sm:$0xf]
          %v630 = vld [vmem:[%s281 + $0x58] sm:$0xf]
          %v631 = vld [vmem:[%s281 + $0x5c] sm:$0xf]
          %v632 = vld [vmem:[%s281 + $0x60] sm:$0xf]
          %v633 = vld [vmem:[%s281 + $0x64] sm:$0xf]
          %v634 = vld [vmem:[%s281 + $0x68] sm:$0xf]
          %v635 = vld [vmem:[%s281 + $0x6c] sm:$0xf]
          %v636 = vld [vmem:[%s281 + $0x70] sm:$0xf]
          %v637 = vld [vmem:[%s281 + $0x74] sm:$0xf]
          %v638 = vld [vmem:[%s281 + $0x78] sm:$0xf]
          %v639 = vld [vmem:[%s281 + $0x7c] sm:$0xf]
          %v672 = vunpack.c.l.b16 %v608
          %v673 = vunpack.c.l.b16 %v609
          %v674 = vunpack.c.l.b16 %v610
          %v675 = vunpack.c.l.b16 %v611
          %v676 = vunpack.c.l.b16 %v612
          %v677 = vunpack.c.l.b16 %v613
          %v678 = vunpack.c.l.b16 %v614
          %v679 = vunpack.c.l.b16 %v615
          %v680 = vunpack.c.l.b16 %v616
          %v681 = vunpack.c.l.b16 %v617
          %v682 = vunpack.c.l.b16 %v618
          %v683 = vunpack.c.l.b16 %v619
          %v684 = vunpack.c.l.b16 %v620
          %v685 = vunpack.c.l.b16 %v621
          %v686 = vunpack.c.l.b16 %v622
          %v687 = vunpack.c.l.b16 %v623
          %v688 = vunpack.c.l.b16 %v624
          %v689 = vunpack.c.l.b16 %v625
          %v690 = vunpack.c.l.b16 %v626
          %v691 = vunpack.c.l.b16 %v627
          %v692 = vunpack.c.l.b16 %v628
          %v693 = vunpack.c.l.b16 %v629
          %v694 = vunpack.c.l.b16 %v630
          %v695 = vunpack.c.l.b16 %v631
          %v696 = vunpack.c.l.b16 %v632
          %v697 = vunpack.c.l.b16 %v633
          %v698 = vunpack.c.l.b16 %v634
          %v699 = vunpack.c.l.b16 %v635
          %v700 = vunpack.c.l.b16 %v636
          %v701 = vunpack.c.l.b16 %v637
          %v702 = vunpack.c.l.b16 %v638
          %v703 = vunpack.c.l.b16 %v639
          %v704 = vpack.c.b16 %v673, %v672
          %v705 = vpack.c.b16 %v675, %v674
          %v706 = vpack.c.b16 %v677, %v676
          %v707 = vpack.c.b16 %v679, %v678
          %v708 = vpack.c.b16 %v681, %v680
          %v709 = vpack.c.b16 %v683, %v682
          %v710 = vpack.c.b16 %v685, %v684
          %v711 = vpack.c.b16 %v687, %v686
          %v712 = vpack.c.b16 %v689, %v688
          %v713 = vpack.c.b16 %v691, %v690
          %v714 = vpack.c.b16 %v693, %v692
          %v715 = vpack.c.b16 %v695, %v694
          %v716 = vpack.c.b16 %v697, %v696
          %v717 = vpack.c.b16 %v699, %v698
          %v718 = vpack.c.b16 %v701, %v700
          %v719 = vpack.c.b16 %v703, %v702
          %736 = vmatprep.subr.bf16.mxu0 0
          %737 = vmatpush1.bf16.msra.mxu0 %v704
          %738 = vmatprep.subr.bf16.mxu0 0
          %739 = vmatpush1.bf16.msra.mxu0 %v705
          %740 = vmatprep.subr.bf16.mxu0 0
          %741 = vmatpush1.bf16.msra.mxu0 %v706
          %742 = vmatprep.subr.bf16.mxu0 0
          %743 = vmatpush1.bf16.msra.mxu0 %v707
          %744 = vmatprep.subr.bf16.mxu0 0
          %745 = vmatpush1.bf16.msra.mxu0 %v708
          %746 = vmatprep.subr.bf16.mxu0 0
          %747 = vmatpush1.bf16.msra.mxu0 %v709
          %748 = vmatprep.subr.bf16.mxu0 0
          %749 = vmatpush1.bf16.msra.mxu0 %v710
          %750 = vmatprep.subr.bf16.mxu0 0
          %751 = vmatpush1.bf16.msra.mxu0 %v711
          %752 = vmatprep.subr.bf16.mxu0 0
          %753 = vmatpush1.bf16.msra.mxu0 %v712
          %754 = vmatprep.subr.bf16.mxu0 0
          %755 = vmatpush1.bf16.msra.mxu0 %v713
          %756 = vmatprep.subr.bf16.mxu0 0
          %757 = vmatpush1.bf16.msra.mxu0 %v714
          %758 = vmatprep.subr.bf16.mxu0 0
          %759 = vmatpush1.bf16.msra.mxu0 %v715
          %760 = vmatprep.subr.bf16.mxu0 0
          %761 = vmatpush1.bf16.msra.mxu0 %v716
          %762 = vmatprep.subr.bf16.mxu0 0
          %763 = vmatpush1.bf16.msra.mxu0 %v717
          %764 = vmatprep.subr.bf16.mxu0 0
          %765 = vmatpush1.bf16.msra.mxu0 %v718
          %766 = vmatprep.subr.bf16.mxu0 0
          %767 = vmatpush1.bf16.msra.mxu0 %v719
          %768 = vmatprep.mubr.bf16.mxu0 %v545
          %769 = vmatmul.mubr.bf16.gmra.mrb[0].mxu0 %v544
          %v770 = vpop.f32.mrb[0].mxu0
          %v771 = vadd.f32 0.0, %v770
          %v772 = vpop.f32.mrb[0].mxu0
          %v773 = vpop.f32.mrb[0].mxu0
          %v774 = vadd.f32 0.0, %v773
          %v775 = vpop.f32.mrb[0].mxu0
          %776 = vmatprep.mubr.bf16.mxu0 %v547
          %777 = vmatmul.mubr.bf16.gmra.mrb[0].mxu0 %v546
          %v778 = vpop.f32.mrb[0].mxu0
          %v779 = vadd.f32 0.0, %v778
          %v780 = vpop.f32.mrb[0].mxu0
          %v781 = vpop.f32.mrb[0].mxu0
          %v782 = vadd.f32 0.0, %v781
          %v783 = vpop.f32.mrb[0].mxu0
          %784 = vmatprep.mubr.bf16.mxu0 %v549
          %785 = vmatmul.mubr.bf16.gmra.mrb[0].mxu0 %v548
          %v786 = vpop.f32.mrb[0].mxu0
          %v787 = vadd.f32 0.0, %v786
          %v788 = vpop.f32.mrb[0].mxu0
          %v789 = vpop.f32.mrb[0].mxu0
          %v790 = vadd.f32 0.0, %v789
          %v791 = vpop.f32.mrb[0].mxu0
          %792 = vmatprep.mubr.bf16.mxu0 %v551
          %793 = vmatmul.mubr.bf16.gmra.mrb[0].mxu0 %v550
          %v794 = vpop.f32.mrb[0].mxu0
          %v795 = vadd.f32 0.0, %v794
          %v796 = vpop.f32.mrb[0].mxu0
          %v797 = vpop.f32.mrb[0].mxu0
          %v798 = vadd.f32 0.0, %v797
          %v799 = vpop.f32.mrb[0].mxu0
          %800 = vmatprep.mubr.bf16.mxu0 %v553
          %801 = vmatmul.mubr.bf16.gmra.mrb[0].mxu0 %v552
          %v802 = vpop.f32.mrb[0].mxu0
          %v803 = vadd.f32 0.0, %v802
          %v804 = vpop.f32.mrb[0].mxu0
          %v805 = vpop.f32.mrb[0].mxu0
          %v806 = vadd.f32 0.0, %v805
          %v807 = vpop.f32.mrb[0].mxu0
          %808 = vmatprep.mubr.bf16.mxu0 %v555
          %809 = vmatmul.mubr.bf16.gmra.mrb[0].mxu0 %v554
          %v810 = vpop.f32.mrb[0].mxu0
          %v811 = vadd.f32 0.0, %v810
          %v812 = vpop.f32.mrb[0].mxu0
          %v813 = vpop.f32.mrb[0].mxu0
          %v814 = vadd.f32 0.0, %v813
          %v815 = vpop.f32.mrb[0].mxu0
          %816 = vmatprep.mubr.bf16.mxu0 %v557
          %817 = vmatmul.mubr.bf16.gmra.mrb[0].mxu0 %v556
          %v818 = vpop.f32.mrb[0].mxu0
          %v819 = vadd.f32 0.0, %v818
          %v820 = vpop.f32.mrb[0].mxu0
          %v821 = vpop.f32.mrb[0].mxu0
          %v822 = vadd.f32 0.0, %v821
          %v823 = vpop.f32.mrb[0].mxu0
          %824 = vmatprep.mubr.bf16.mxu0 %v559
          %825 = vmatmul.mubr.bf16.gmra.mrb[0].mxu0 %v558
          %v826 = vpop.f32.mrb[0].mxu0
          %v827 = vadd.f32 0.0, %v826
          %v828 = vpop.f32.mrb[0].mxu0
          %v829 = vpop.f32.mrb[0].mxu0
          %v830 = vadd.f32 0.0, %v829
          %v831 = vpop.f32.mrb[0].mxu0
          %832 = vmatprep.mubr.bf16.mxu0 %v561
          %833 = vmatmul.mubr.bf16.gmra.mrb[0].mxu0 %v560
          %v834 = vpop.f32.mrb[0].mxu0
          %v835 = vadd.f32 0.0, %v834
          %v836 = vpop.f32.mrb[0].mxu0
          %v837 = vpop.f32.mrb[0].mxu0
          %v838 = vadd.f32 0.0, %v837
          %v839 = vpop.f32.mrb[0].mxu0
          %840 = vmatprep.mubr.bf16.mxu0 %v563
          %841 = vmatmul.mubr.bf16.gmra.mrb[0].mxu0 %v562
          %v842 = vpop.f32.mrb[0].mxu0
          %v843 = vadd.f32 0.0, %v842
          %v844 = vpop.f32.mrb[0].mxu0
          %v845 = vpop.f32.mrb[0].mxu0
          %v846 = vadd.f32 0.0, %v845
          %v847 = vpop.f32.mrb[0].mxu0
          %848 = vmatprep.mubr.bf16.mxu0 %v565
          %849 = vmatmul.mubr.bf16.gmra.mrb[0].mxu0 %v564
          %v850 = vpop.f32.mrb[0].mxu0
          %v851 = vadd.f32 0.0, %v850
          %v852 = vpop.f32.mrb[0].mxu0
          %v853 = vpop.f32.mrb[0].mxu0
          %v854 = vadd.f32 0.0, %v853
          %v855 = vpop.f32.mrb[0].mxu0
          %856 = vmatprep.mubr.bf16.mxu0 %v567
          %857 = vmatmul.mubr.bf16.gmra.mrb[0].mxu0 %v566
          %v858 = vpop.f32.mrb[0].mxu0
          %v859 = vadd.f32 0.0, %v858
          %v860 = vpop.f32.mrb[0].mxu0
          %v861 = vpop.f32.mrb[0].mxu0
          %v862 = vadd.f32 0.0, %v861
          %v863 = vpop.f32.mrb[0].mxu0
          %864 = vmatprep.mubr.bf16.mxu0 %v569
          %865 = vmatmul.mubr.bf16.gmra.mrb[0].mxu0 %v568
          %v866 = vpop.f32.mrb[0].mxu0
          %v867 = vadd.f32 0.0, %v866
          %v868 = vpop.f32.mrb[0].mxu0
          %v869 = vpop.f32.mrb[0].mxu0
          %v870 = vadd.f32 0.0, %v869
          %v871 = vpop.f32.mrb[0].mxu0
          %872 = vmatprep.mubr.bf16.mxu0 %v571
          %873 = vmatmul.mubr.bf16.gmra.mrb[0].mxu0 %v570
          %v874 = vpop.f32.mrb[0].mxu0
          %v875 = vadd.f32 0.0, %v874
          %v876 = vpop.f32.mrb[0].mxu0
          %v877 = vpop.f32.mrb[0].mxu0
          %v878 = vadd.f32 0.0, %v877
          %v879 = vpop.f32.mrb[0].mxu0
          %880 = vmatprep.mubr.bf16.mxu0 %v573
          %881 = vmatmul.mubr.bf16.gmra.mrb[0].mxu0 %v572
          %v882 = vpop.f32.mrb[0].mxu0
          %v883 = vadd.f32 0.0, %v882
          %v884 = vpop.f32.mrb[0].mxu0
          %v885 = vpop.f32.mrb[0].mxu0
          %v886 = vadd.f32 0.0, %v885
          %v887 = vpop.f32.mrb[0].mxu0
          %888 = vmatprep.mubr.bf16.mxu0 %v575
          %889 = vmatmul.mubr.bf16.gmra.mrb[0].mxu0 %v574
          %v890 = vpop.f32.mrb[0].mxu0
          %v891 = vadd.f32 0.0, %v890
          %v892 = vpop.f32.mrb[0].mxu0
          %v893 = vpop.f32.mrb[0].mxu0
          %v894 = vadd.f32 0.0, %v893
          %v895 = vpop.f32.mrb[0].mxu0
          %896 = vdwg.mxu0
          %v897 = vadd.f32 %v576, %v771
          %v898 = vadd.f32 %v577, %v774
          %v899 = vadd.f32 %v578, %v779
          %v900 = vadd.f32 %v579, %v782
          %v901 = vadd.f32 %v580, %v787
          %v902 = vadd.f32 %v581, %v790
          %v903 = vadd.f32 %v582, %v795
          %v904 = vadd.f32 %v583, %v798
          %v905 = vadd.f32 %v584, %v803
          %v906 = vadd.f32 %v585, %v806
          %v907 = vadd.f32 %v586, %v811
          %v908 = vadd.f32 %v587, %v814
          %v909 = vadd.f32 %v588, %v819
          %v910 = vadd.f32 %v589, %v822
          %v911 = vadd.f32 %v590, %v827
          %v912 = vadd.f32 %v591, %v830
          %v913 = vadd.f32 %v592, %v835
          %v914 = vadd.f32 %v593, %v838
          %v915 = vadd.f32 %v594, %v843
          %v916 = vadd.f32 %v595, %v846
          %v917 = vadd.f32 %v596, %v851
          %v918 = vadd.f32 %v597, %v854
          %v919 = vadd.f32 %v598, %v859
          %v920 = vadd.f32 %v599, %v862
          %v921 = vadd.f32 %v600, %v867
          %v922 = vadd.f32 %v601, %v870
          %v923 = vadd.f32 %v602, %v875
          %v924 = vadd.f32 %v603, %v878
          %v925 = vadd.f32 %v604, %v883
          %v926 = vadd.f32 %v605, %v886
          %v927 = vadd.f32 %v606, %v891
          %v928 = vadd.f32 %v607, %v894
          %929 = vst [vmem:[#allocation2] sm:$0xff] %v897
          %930 = vst [vmem:[#allocation2 + $0x8] sm:$0xff] %v898
          %931 = vst [vmem:[#allocation2 + $0x10] sm:$0xff] %v899
          %932 = vst [vmem:[#allocation2 + $0x18] sm:$0xff] %v900
          %933 = vst [vmem:[#allocation2 + $0x20] sm:$0xff] %v901
          %934 = vst [vmem:[#allocation2 + $0x28] sm:$0xff] %v902
          %935 = vst [vmem:[#allocation2 + $0x30] sm:$0xff] %v903
          %936 = vst [vmem:[#allocation2 + $0x38] sm:$0xff] %v904
          %937 = vst [vmem:[#allocation2 + $0x40] sm:$0xff] %v905
          %938 = vst [vmem:[#allocation2 + $0x48] sm:$0xff] %v906
          %939 = vst [vmem:[#allocation2 + $0x50] sm:$0xff] %v907
          %940 = vst [vmem:[#allocation2 + $0x58] sm:$0xff] %v908
          %941 = vst [vmem:[#allocation2 + $0x60] sm:$0xff] %v909
          %942 = vst [vmem:[#allocation2 + $0x68] sm:$0xff] %v910
          %943 = vst [vmem:[#allocation2 + $0x70] sm:$0xff] %v911
          %944 = vst [vmem:[#allocation2 + $0x78] sm:$0xff] %v912
          %945 = vst [vmem:[#allocation2 + $0x80] sm:$0xff] %v913
          %946 = vst [vmem:[#allocation2 + $0x88] sm:$0xff] %v914
          %947 = vst [vmem:[#allocation2 + $0x90] sm:$0xff] %v915
          %948 = vst [vmem:[#allocation2 + $0x98] sm:$0xff] %v916
          %949 = vst [vmem:[#allocation2 + $0xa0] sm:$0xff] %v917
          %950 = vst [vmem:[#allocation2 + $0xa8] sm:$0xff] %v918
          %951 = vst [vmem:[#allocation2 + $0xb0] sm:$0xff] %v919
          %952 = vst [vmem:[#allocation2 + $0xb8] sm:$0xff] %v920
          %953 = vst [vmem:[#allocation2 + $0xc0] sm:$0xff] %v921
          %954 = vst [vmem:[#allocation2 + $0xc8] sm:$0xff] %v922
          %955 = vst [vmem:[#allocation2 + $0xd0] sm:$0xff] %v923
          %956 = vst [vmem:[#allocation2 + $0xd8] sm:$0xff] %v924
          %957 = vst [vmem:[#allocation2 + $0xe0] sm:$0xff] %v925
          %958 = vst [vmem:[#allocation2 + $0xe8] sm:$0xff] %v926
          %959 = vst [vmem:[#allocation2 + $0xf0] sm:$0xff] %v927
          %960 = vst [vmem:[#allocation2 + $0xf8] sm:$0xff] %v928
          %v961 = vld [vmem:[#allocation3] sm:$0xff]
          %v962 = vld [vmem:[#allocation3 + $0x8] sm:$0xff]
          %v963 = vld [vmem:[#allocation3 + $0x10] sm:$0xff]
          %v964 = vld [vmem:[#allocation3 + $0x18] sm:$0xff]
          %v965 = vld [vmem:[#allocation3 + $0x20] sm:$0xff]
          %v966 = vld [vmem:[#allocation3 + $0x28] sm:$0xff]
          %v967 = vld [vmem:[#allocation3 + $0x30] sm:$0xff]
          %v968 = vld [vmem:[#allocation3 + $0x38] sm:$0xff]
          %v969 = vld [vmem:[#allocation3 + $0x40] sm:$0xff]
          %v970 = vld [vmem:[#allocation3 + $0x48] sm:$0xff]
          %v971 = vld [vmem:[#allocation3 + $0x50] sm:$0xff]
          %v972 = vld [vmem:[#allocation3 + $0x58] sm:$0xff]
          %v973 = vld [vmem:[#allocation3 + $0x60] sm:$0xff]
          %v974 = vld [vmem:[#allocation3 + $0x68] sm:$0xff]
          %v975 = vld [vmem:[#allocation3 + $0x70] sm:$0xff]
          %v976 = vld [vmem:[#allocation3 + $0x78] sm:$0xff]
          %v977 = vld [vmem:[#allocation3 + $0x80] sm:$0xff]
          %v978 = vld [vmem:[#allocation3 + $0x88] sm:$0xff]
          %v979 = vld [vmem:[#allocation3 + $0x90] sm:$0xff]
          %v980 = vld [vmem:[#allocation3 + $0x98] sm:$0xff]
          %v981 = vld [vmem:[#allocation3 + $0xa0] sm:$0xff]
          %v982 = vld [vmem:[#allocation3 + $0xa8] sm:$0xff]
          %v983 = vld [vmem:[#allocation3 + $0xb0] sm:$0xff]
          %v984 = vld [vmem:[#allocation3 + $0xb8] sm:$0xff]
          %v985 = vld [vmem:[#allocation3 + $0xc0] sm:$0xff]
          %v986 = vld [vmem:[#allocation3 + $0xc8] sm:$0xff]
          %v987 = vld [vmem:[#allocation3 + $0xd0] sm:$0xff]
          %v988 = vld [vmem:[#allocation3 + $0xd8] sm:$0xff]
          %v989 = vld [vmem:[#allocation3 + $0xe0] sm:$0xff]
          %v990 = vld [vmem:[#allocation3 + $0xe8] sm:$0xff]
          %v991 = vld [vmem:[#allocation3 + $0xf0] sm:$0xff]
          %v992 = vld [vmem:[#allocation3 + $0xf8] sm:$0xff]
          %v993 = vadd.f32 %v480, %v481
          %994 = vadd.xlane.f32.xlu0 %v993
          %v995 = vpop.xlane.xlu0 %994
          %v996 = vadd.f32 %v482, %v483
          %997 = vadd.xlane.f32.xlu0 %v996
          %v998 = vpop.xlane.xlu0 %997
          %v999 = vadd.f32 %v484, %v485
          %1000 = vadd.xlane.f32.xlu0 %v999
          %v1001 = vpop.xlane.xlu0 %1000
          %v1002 = vadd.f32 %v486, %v487
          %1003 = vadd.xlane.f32.xlu0 %v1002
          %v1004 = vpop.xlane.xlu0 %1003
          %v1005 = vadd.f32 %v488, %v489
          %1006 = vadd.xlane.f32.xlu0 %v1005
          %v1007 = vpop.xlane.xlu0 %1006
          %v1008 = vadd.f32 %v490, %v491
          %1009 = vadd.xlane.f32.xlu0 %v1008
          %v1010 = vpop.xlane.xlu0 %1009
          %v1011 = vadd.f32 %v492, %v493
          %1012 = vadd.xlane.f32.xlu0 %v1011
          %v1013 = vpop.xlane.xlu0 %1012
          %v1014 = vadd.f32 %v494, %v495
          %1015 = vadd.xlane.f32.xlu0 %v1014
          %v1016 = vpop.xlane.xlu0 %1015
          %v1017 = vadd.f32 %v496, %v497
          %1018 = vadd.xlane.f32.xlu0 %v1017
          %v1019 = vpop.xlane.xlu0 %1018
          %v1020 = vadd.f32 %v498, %v499
          %1021 = vadd.xlane.f32.xlu0 %v1020
          %v1022 = vpop.xlane.xlu0 %1021
          %v1023 = vadd.f32 %v500, %v501
          %1024 = vadd.xlane.f32.xlu0 %v1023
          %v1025 = vpop.xlane.xlu0 %1024
          %v1026 = vadd.f32 %v502, %v503
          %1027 = vadd.xlane.f32.xlu0 %v1026
          %v1028 = vpop.xlane.xlu0 %1027
          %v1029 = vadd.f32 %v504, %v505
          %1030 = vadd.xlane.f32.xlu0 %v1029
          %v1031 = vpop.xlane.xlu0 %1030
          %v1032 = vadd.f32 %v506, %v507
          %1033 = vadd.xlane.f32.xlu0 %v1032
          %v1034 = vpop.xlane.xlu0 %1033
          %v1035 = vadd.f32 %v508, %v509
          %1036 = vadd.xlane.f32.xlu0 %v1035
          %v1037 = vpop.xlane.xlu0 %1036
          %v1038 = vadd.f32 %v510, %v511
          %1039 = vadd.xlane.f32.xlu0 %v1038
          %v1040 = vpop.xlane.xlu0 %1039
          %v1041 = vadd.f32 %v512, %v513
          %1042 = vadd.xlane.f32.xlu0 %v1041
          %v1043 = vpop.xlane.xlu0 %1042
          %v1044 = vadd.f32 %v514, %v515
          %1045 = vadd.xlane.f32.xlu0 %v1044
          %v1046 = vpop.xlane.xlu0 %1045
          %v1047 = vadd.f32 %v516, %v517
          %1048 = vadd.xlane.f32.xlu0 %v1047
          %v1049 = vpop.xlane.xlu0 %1048
          %v1050 = vadd.f32 %v518, %v519
          %1051 = vadd.xlane.f32.xlu0 %v1050
          %v1052 = vpop.xlane.xlu0 %1051
          %v1053 = vadd.f32 %v520, %v521
          %1054 = vadd.xlane.f32.xlu0 %v1053
          %v1055 = vpop.xlane.xlu0 %1054
          %v1056 = vadd.f32 %v522, %v523
          %1057 = vadd.xlane.f32.xlu0 %v1056
          %v1058 = vpop.xlane.xlu0 %1057
          %v1059 = vadd.f32 %v524, %v525
          %1060 = vadd.xlane.f32.xlu0 %v1059
          %v1061 = vpop.xlane.xlu0 %1060
          %v1062 = vadd.f32 %v526, %v527
          %1063 = vadd.xlane.f32.xlu0 %v1062
          %v1064 = vpop.xlane.xlu0 %1063
          %v1065 = vadd.f32 %v528, %v529
          %1066 = vadd.xlane.f32.xlu0 %v1065
          %v1067 = vpop.xlane.xlu0 %1066
          %v1068 = vadd.f32 %v530, %v531
          %1069 = vadd.xlane.f32.xlu0 %v1068
          %v1070 = vpop.xlane.xlu0 %1069
          %v1071 = vadd.f32 %v532, %v533
          %1072 = vadd.xlane.f32.xlu0 %v1071
          %v1073 = vpop.xlane.xlu0 %1072
          %v1074 = vadd.f32 %v534, %v535
          %1075 = vadd.xlane.f32.xlu0 %v1074
          %v1076 = vpop.xlane.xlu0 %1075
          %v1077 = vadd.f32 %v536, %v537
          %1078 = vadd.xlane.f32.xlu0 %v1077
          %v1079 = vpop.xlane.xlu0 %1078
          %v1080 = vadd.f32 %v538, %v539
          %1081 = vadd.xlane.f32.xlu0 %v1080
          %v1082 = vpop.xlane.xlu0 %1081
          %v1083 = vadd.f32 %v540, %v541
          %1084 = vadd.xlane.f32.xlu0 %v1083
          %v1085 = vpop.xlane.xlu0 %1084
          %v1086 = vadd.f32 %v542, %v543
          %1087 = vadd.xlane.f32.xlu0 %v1086
          %v1088 = vpop.xlane.xlu0 %1087
          %v1089 = vadd.f32 %v961, %v995
          %v1090 = vadd.f32 %v962, %v998
          %v1091 = vadd.f32 %v963, %v1001
          %v1092 = vadd.f32 %v964, %v1004
          %v1093 = vadd.f32 %v965, %v1007
          %v1094 = vadd.f32 %v966, %v1010
          %v1095 = vadd.f32 %v967, %v1013
          %v1096 = vadd.f32 %v968, %v1016
          %v1097 = vadd.f32 %v969, %v1019
          %v1098 = vadd.f32 %v970, %v1022
          %v1099 = vadd.f32 %v971, %v1025
          %v1100 = vadd.f32 %v972, %v1028
          %v1101 = vadd.f32 %v973, %v1031
          %v1102 = vadd.f32 %v974, %v1034
          %v1103 = vadd.f32 %v975, %v1037
          %v1104 = vadd.f32 %v976, %v1040
          %v1105 = vadd.f32 %v977, %v1043
          %v1106 = vadd.f32 %v978, %v1046
          %v1107 = vadd.f32 %v979, %v1049
          %v1108 = vadd.f32 %v980, %v1052
          %v1109 = vadd.f32 %v981, %v1055
          %v1110 = vadd.f32 %v982, %v1058
          %v1111 = vadd.f32 %v983, %v1061
          %v1112 = vadd.f32 %v984, %v1064
          %v1113 = vadd.f32 %v985, %v1067
          %v1114 = vadd.f32 %v986, %v1070
          %v1115 = vadd.f32 %v987, %v1073
          %v1116 = vadd.f32 %v988, %v1076
          %v1117 = vadd.f32 %v989, %v1079
          %v1118 = vadd.f32 %v990, %v1082
          %v1119 = vadd.f32 %v991, %v1085
          %v1120 = vadd.f32 %v992, %v1088
          %vm1121 = vcmask 7168
          %1122 = vst.msk [vmem:[#allocation3] sm:$0xff] %vm1121, %v1089
          %1123 = vst.msk [vmem:[#allocation3 + $0x8] sm:$0xff] %vm1121, %v1090
          %1124 = vst.msk [vmem:[#allocation3 + $0x10] sm:$0xff] %vm1121, %v1091
          %1125 = vst.msk [vmem:[#allocation3 + $0x18] sm:$0xff] %vm1121, %v1092
          %1126 = vst.msk [vmem:[#allocation3 + $0x20] sm:$0xff] %vm1121, %v1093
          %1127 = vst.msk [vmem:[#allocation3 + $0x28] sm:$0xff] %vm1121, %v1094
          %1128 = vst.msk [vmem:[#allocation3 + $0x30] sm:$0xff] %vm1121, %v1095
          %1129 = vst.msk [vmem:[#allocation3 + $0x38] sm:$0xff] %vm1121, %v1096
          %1130 = vst.msk [vmem:[#allocation3 + $0x40] sm:$0xff] %vm1121, %v1097
          %1131 = vst.msk [vmem:[#allocation3 + $0x48] sm:$0xff] %vm1121, %v1098
          %1132 = vst.msk [vmem:[#allocation3 + $0x50] sm:$0xff] %vm1121, %v1099
          %1133 = vst.msk [vmem:[#allocation3 + $0x58] sm:$0xff] %vm1121, %v1100
          %1134 = vst.msk [vmem:[#allocation3 + $0x60] sm:$0xff] %vm1121, %v1101
          %1135 = vst.msk [vmem:[#allocation3 + $0x68] sm:$0xff] %vm1121, %v1102
          %1136 = vst.msk [vmem:[#allocation3 + $0x70] sm:$0xff] %vm1121, %v1103
          %1137 = vst.msk [vmem:[#allocation3 + $0x78] sm:$0xff] %vm1121, %v1104
          %1138 = vst.msk [vmem:[#allocation3 + $0x80] sm:$0xff] %vm1121, %v1105
          %1139 = vst.msk [vmem:[#allocation3 + $0x88] sm:$0xff] %vm1121, %v1106
          %1140 = vst.msk [vmem:[#allocation3 + $0x90] sm:$0xff] %vm1121, %v1107
          %1141 = vst.msk [vmem:[#allocation3 + $0x98] sm:$0xff] %vm1121, %v1108
          %1142 = vst.msk [vmem:[#allocation3 + $0xa0] sm:$0xff] %vm1121, %v1109
          %1143 = vst.msk [vmem:[#allocation3 + $0xa8] sm:$0xff] %vm1121, %v1110
          %1144 = vst.msk [vmem:[#allocation3 + $0xb0] sm:$0xff] %vm1121, %v1111
          %1145 = vst.msk [vmem:[#allocation3 + $0xb8] sm:$0xff] %vm1121, %v1112
          %1146 = vst.msk [vmem:[#allocation3 + $0xc0] sm:$0xff] %vm1121, %v1113
          %1147 = vst.msk [vmem:[#allocation3 + $0xc8] sm:$0xff] %vm1121, %v1114
          %1148 = vst.msk [vmem:[#allocation3 + $0xd0] sm:$0xff] %vm1121, %v1115
          %1149 = vst.msk [vmem:[#allocation3 + $0xd8] sm:$0xff] %vm1121, %v1116
          %1150 = vst.msk [vmem:[#allocation3 + $0xe0] sm:$0xff] %vm1121, %v1117
          %1151 = vst.msk [vmem:[#allocation3 + $0xe8] sm:$0xff] %vm1121, %v1118
          %1152 = vst.msk [vmem:[#allocation3 + $0xf0] sm:$0xff] %vm1121, %v1119
          %1153 = vst.msk [vmem:[#allocation3 + $0xf8] sm:$0xff] %vm1121, %v1120
        $region56: #{tpu_custom_call.1} parent=35 // pred_fallthru
          _
        %p1154 = scmp.eq.s32.totalorder %s39, 1
        // Predicated region
        $region57: #{tpu_custom_call.1} parent=35 // pred_check
          %p1155 = pneg %p1154
        $region58: #{tpu_custom_call.1} parent=35 // pred_check_branch
          %1157 = sbr.rel (%p1155) target = $region60
        $region59: #{tpu_custom_call.1} parent=35 // pred_region
          %v1158 = vld [vmem:[#allocation3] sm:$0xff]
          %v1159 = vld [vmem:[#allocation3 + $0x8] sm:$0xff]
          %v1160 = vld [vmem:[#allocation3 + $0x10] sm:$0xff]
          %v1161 = vld [vmem:[#allocation3 + $0x18] sm:$0xff]
          %v1162 = vld [vmem:[#allocation3 + $0x20] sm:$0xff]
          %v1163 = vld [vmem:[#allocation3 + $0x28] sm:$0xff]
          %v1164 = vld [vmem:[#allocation3 + $0x30] sm:$0xff]
          %v1165 = vld [vmem:[#allocation3 + $0x38] sm:$0xff]
          %v1166 = vld [vmem:[#allocation3 + $0x40] sm:$0xff]
          %v1167 = vld [vmem:[#allocation3 + $0x48] sm:$0xff]
          %v1168 = vld [vmem:[#allocation3 + $0x50] sm:$0xff]
          %v1169 = vld [vmem:[#allocation3 + $0x58] sm:$0xff]
          %v1170 = vld [vmem:[#allocation3 + $0x60] sm:$0xff]
          %v1171 = vld [vmem:[#allocation3 + $0x68] sm:$0xff]
          %v1172 = vld [vmem:[#allocation3 + $0x70] sm:$0xff]
          %v1173 = vld [vmem:[#allocation3 + $0x78] sm:$0xff]
          %v1174 = vld [vmem:[#allocation3 + $0x80] sm:$0xff]
          %v1175 = vld [vmem:[#allocation3 + $0x88] sm:$0xff]
          %v1176 = vld [vmem:[#allocation3 + $0x90] sm:$0xff]
          %v1177 = vld [vmem:[#allocation3 + $0x98] sm:$0xff]
          %v1178 = vld [vmem:[#allocation3 + $0xa0] sm:$0xff]
          %v1179 = vld [vmem:[#allocation3 + $0xa8] sm:$0xff]
          %v1180 = vld [vmem:[#allocation3 + $0xb0] sm:$0xff]
          %v1181 = vld [vmem:[#allocation3 + $0xb8] sm:$0xff]
          %v1182 = vld [vmem:[#allocation3 + $0xc0] sm:$0xff]
          %v1183 = vld [vmem:[#allocation3 + $0xc8] sm:$0xff]
          %v1184 = vld [vmem:[#allocation3 + $0xd0] sm:$0xff]
          %v1185 = vld [vmem:[#allocation3 + $0xd8] sm:$0xff]
          %v1186 = vld [vmem:[#allocation3 + $0xe0] sm:$0xff]
          %v1187 = vld [vmem:[#allocation3 + $0xe8] sm:$0xff]
          %v1188 = vld [vmem:[#allocation3 + $0xf0] sm:$0xff]
          %v1189 = vld [vmem:[#allocation3 + $0xf8] sm:$0xff]
          %v1190 = vmax.f32 %v1158, 1.0
          %v1191 = vmax.f32 %v1159, 1.0
          %v1192 = vmax.f32 %v1160, 1.0
          %v1193 = vmax.f32 %v1161, 1.0
          %v1194 = vmax.f32 %v1162, 1.0
          %v1195 = vmax.f32 %v1163, 1.0
          %v1196 = vmax.f32 %v1164, 1.0
          %v1197 = vmax.f32 %v1165, 1.0
          %v1198 = vmax.f32 %v1166, 1.0
          %v1199 = vmax.f32 %v1167, 1.0
          %v1200 = vmax.f32 %v1168, 1.0
          %v1201 = vmax.f32 %v1169, 1.0
          %v1202 = vmax.f32 %v1170, 1.0
          %v1203 = vmax.f32 %v1171, 1.0
          %v1204 = vmax.f32 %v1172, 1.0
          %v1205 = vmax.f32 %v1173, 1.0
          %v1206 = vmax.f32 %v1174, 1.0
          %v1207 = vmax.f32 %v1175, 1.0
          %v1208 = vmax.f32 %v1176, 1.0
          %v1209 = vmax.f32 %v1177, 1.0
          %v1210 = vmax.f32 %v1178, 1.0
          %v1211 = vmax.f32 %v1179, 1.0
          %v1212 = vmax.f32 %v1180, 1.0
          %v1213 = vmax.f32 %v1181, 1.0
          %v1214 = vmax.f32 %v1182, 1.0
          %v1215 = vmax.f32 %v1183, 1.0
          %v1216 = vmax.f32 %v1184, 1.0
          %v1217 = vmax.f32 %v1185, 1.0
          %v1218 = vmax.f32 %v1186, 1.0
          %v1219 = vmax.f32 %v1187, 1.0
          %v1220 = vmax.f32 %v1188, 1.0
          %v1221 = vmax.f32 %v1189, 1.0
          %v1222 = vmin.f32 %v1190, 16.0
          %v1223 = vmin.f32 %v1191, 16.0
          %v1224 = vmin.f32 %v1192, 16.0
          %v1225 = vmin.f32 %v1193, 16.0
          %v1226 = vmin.f32 %v1194, 16.0
          %v1227 = vmin.f32 %v1195, 16.0
          %v1228 = vmin.f32 %v1196, 16.0
          %v1229 = vmin.f32 %v1197, 16.0
          %v1230 = vmin.f32 %v1198, 16.0
          %v1231 = vmin.f32 %v1199, 16.0
          %v1232 = vmin.f32 %v1200, 16.0
          %v1233 = vmin.f32 %v1201, 16.0
          %v1234 = vmin.f32 %v1202, 16.0
          %v1235 = vmin.f32 %v1203, 16.0
          %v1236 = vmin.f32 %v1204, 16.0
          %v1237 = vmin.f32 %v1205, 16.0
          %v1238 = vmin.f32 %v1206, 16.0
          %v1239 = vmin.f32 %v1207, 16.0
          %v1240 = vmin.f32 %v1208, 16.0
          %v1241 = vmin.f32 %v1209, 16.0
          %v1242 = vmin.f32 %v1210, 16.0
          %v1243 = vmin.f32 %v1211, 16.0
          %v1244 = vmin.f32 %v1212, 16.0
          %v1245 = vmin.f32 %v1213, 16.0
          %v1246 = vmin.f32 %v1214, 16.0
          %v1247 = vmin.f32 %v1215, 16.0
          %v1248 = vmin.f32 %v1216, 16.0
          %v1249 = vmin.f32 %v1217, 16.0
          %v1250 = vmin.f32 %v1218, 16.0
          %v1251 = vmin.f32 %v1219, 16.0
          %v1252 = vmin.f32 %v1220, 16.0
          %v1253 = vmin.f32 %v1221, 16.0
          %v1254 = vrsqrt.pop %v1222
          %v1255 = vrsqrt.pop %v1223
          %v1256 = vrsqrt.pop %v1224
          %v1257 = vrsqrt.pop %v1225
          %v1258 = vrsqrt.pop %v1226
          %v1259 = vrsqrt.pop %v1227
          %v1260 = vrsqrt.pop %v1228
          %v1261 = vrsqrt.pop %v1229
          %v1262 = vrsqrt.pop %v1230
          %v1263 = vrsqrt.pop %v1231
          %v1264 = vrsqrt.pop %v1232
          %v1265 = vrsqrt.pop %v1233
          %v1266 = vrsqrt.pop %v1234
          %v1267 = vrsqrt.pop %v1235
          %v1268 = vrsqrt.pop %v1236
          %v1269 = vrsqrt.pop %v1237
          %v1270 = vrsqrt.pop %v1238
          %v1271 = vrsqrt.pop %v1239
          %v1272 = vrsqrt.pop %v1240
          %v1273 = vrsqrt.pop %v1241
          %v1274 = vrsqrt.pop %v1242
          %v1275 = vrsqrt.pop %v1243
          %v1276 = vrsqrt.pop %v1244
          %v1277 = vrsqrt.pop %v1245
          %v1278 = vrsqrt.pop %v1246
          %v1279 = vrsqrt.pop %v1247
          %v1280 = vrsqrt.pop %v1248
          %v1281 = vrsqrt.pop %v1249
          %v1282 = vrsqrt.pop %v1250
          %v1283 = vrsqrt.pop %v1251
          %v1284 = vrsqrt.pop %v1252
          %v1285 = vrsqrt.pop %v1253
          %v1286 = vld [vmem:[#allocation2] sm:$0xff]
          %v1287 = vld [vmem:[#allocation2 + $0x8] sm:$0xff]
          %v1288 = vld [vmem:[#allocation2 + $0x10] sm:$0xff]
          %v1289 = vld [vmem:[#allocation2 + $0x18] sm:$0xff]
          %v1290 = vld [vmem:[#allocation2 + $0x20] sm:$0xff]
          %v1291 = vld [vmem:[#allocation2 + $0x28] sm:$0xff]
          %v1292 = vld [vmem:[#allocation2 + $0x30] sm:$0xff]
          %v1293 = vld [vmem:[#allocation2 + $0x38] sm:$0xff]
          %v1294 = vld [vmem:[#allocation2 + $0x40] sm:$0xff]
          %v1295 = vld [vmem:[#allocation2 + $0x48] sm:$0xff]
          %v1296 = vld [vmem:[#allocation2 + $0x50] sm:$0xff]
          %v1297 = vld [vmem:[#allocation2 + $0x58] sm:$0xff]
          %v1298 = vld [vmem:[#allocation2 + $0x60] sm:$0xff]
          %v1299 = vld [vmem:[#allocation2 + $0x68] sm:$0xff]
          %v1300 = vld [vmem:[#allocation2 + $0x70] sm:$0xff]
          %v1301 = vld [vmem:[#allocation2 + $0x78] sm:$0xff]
          %v1302 = vld [vmem:[#allocation2 + $0x80] sm:$0xff]
          %v1303 = vld [vmem:[#allocation2 + $0x88] sm:$0xff]
          %v1304 = vld [vmem:[#allocation2 + $0x90] sm:$0xff]
          %v1305 = vld [vmem:[#allocation2 + $0x98] sm:$0xff]
          %v1306 = vld [vmem:[#allocation2 + $0xa0] sm:$0xff]
          %v1307 = vld [vmem:[#allocation2 + $0xa8] sm:$0xff]
          %v1308 = vld [vmem:[#allocation2 + $0xb0] sm:$0xff]
          %v1309 = vld [vmem:[#allocation2 + $0xb8] sm:$0xff]
          %v1310 = vld [vmem:[#allocation2 + $0xc0] sm:$0xff]
          %v1311 = vld [vmem:[#allocation2 + $0xc8] sm:$0xff]
          %v1312 = vld [vmem:[#allocation2 + $0xd0] sm:$0xff]
          %v1313 = vld [vmem:[#allocation2 + $0xd8] sm:$0xff]
          %v1314 = vld [vmem:[#allocation2 + $0xe0] sm:$0xff]
          %v1315 = vld [vmem:[#allocation2 + $0xe8] sm:$0xff]
          %v1316 = vld [vmem:[#allocation2 + $0xf0] sm:$0xff]
          %v1317 = vld [vmem:[#allocation2 + $0xf8] sm:$0xff]
          %v1318 = vpack.c.bf16 %v1287, %v1286
          %v1319 = vpack.c.bf16 %v1289, %v1288
          %v1320 = vpack.c.bf16 %v1291, %v1290
          %v1321 = vpack.c.bf16 %v1293, %v1292
          %v1322 = vpack.c.bf16 %v1295, %v1294
          %v1323 = vpack.c.bf16 %v1297, %v1296
          %v1324 = vpack.c.bf16 %v1299, %v1298
          %v1325 = vpack.c.bf16 %v1301, %v1300
          %v1326 = vpack.c.bf16 %v1303, %v1302
          %v1327 = vpack.c.bf16 %v1305, %v1304
          %v1328 = vpack.c.bf16 %v1307, %v1306
          %v1329 = vpack.c.bf16 %v1309, %v1308
          %v1330 = vpack.c.bf16 %v1311, %v1310
          %v1331 = vpack.c.bf16 %v1313, %v1312
          %v1332 = vpack.c.bf16 %v1315, %v1314
          %v1333 = vpack.c.bf16 %v1317, %v1316
          %v1334 = vld [vmem:[#allocation12] sm:$0xf]
          %v1335 = vld [vmem:[#allocation12 + $0x4] sm:$0xf]
          %v1336 = vld [vmem:[#allocation12 + $0x8] sm:$0xf]
          %v1337 = vld [vmem:[#allocation12 + $0xc] sm:$0xf]
          %v1338 = vld [vmem:[#allocation12 + $0x10] sm:$0xf]
          %v1339 = vld [vmem:[#allocation12 + $0x14] sm:$0xf]
          %v1340 = vld [vmem:[#allocation12 + $0x18] sm:$0xf]
          %v1341 = vld [vmem:[#allocation12 + $0x1c] sm:$0xf]
          %v1342 = vld [vmem:[#allocation12 + $0x20] sm:$0xf]
          %v1343 = vld [vmem:[#allocation12 + $0x24] sm:$0xf]
          %v1344 = vld [vmem:[#allocation12 + $0x28] sm:$0xf]
          %v1345 = vld [vmem:[#allocation12 + $0x2c] sm:$0xf]
          %v1346 = vld [vmem:[#allocation12 + $0x30] sm:$0xf]
          %v1347 = vld [vmem:[#allocation12 + $0x34] sm:$0xf]
          %v1348 = vld [vmem:[#allocation12 + $0x38] sm:$0xf]
          %v1349 = vld [vmem:[#allocation12 + $0x3c] sm:$0xf]
          %v1366 = vunpack.c.l.b16 %v1334
          %v1367 = vunpack.c.l.b16 %v1335
          %v1368 = vunpack.c.l.b16 %v1336
          %v1369 = vunpack.c.l.b16 %v1337
          %v1370 = vunpack.c.l.b16 %v1338
          %v1371 = vunpack.c.l.b16 %v1339
          %v1372 = vunpack.c.l.b16 %v1340
          %v1373 = vunpack.c.l.b16 %v1341
          %v1374 = vunpack.c.l.b16 %v1342
          %v1375 = vunpack.c.l.b16 %v1343
          %v1376 = vunpack.c.l.b16 %v1344
          %v1377 = vunpack.c.l.b16 %v1345
          %v1378 = vunpack.c.l.b16 %v1346
          %v1379 = vunpack.c.l.b16 %v1347
          %v1380 = vunpack.c.l.b16 %v1348
          %v1381 = vunpack.c.l.b16 %v1349
          %v1382 = vpack.c.b16 %v1367, %v1366
          %v1383 = vpack.c.b16 %v1369, %v1368
          %v1384 = vpack.c.b16 %v1371, %v1370
          %v1385 = vpack.c.b16 %v1373, %v1372
          %v1386 = vpack.c.b16 %v1375, %v1374
          %v1387 = vpack.c.b16 %v1377, %v1376
          %v1388 = vpack.c.b16 %v1379, %v1378
          %v1389 = vpack.c.b16 %v1381, %v1380
          %1398 = vmatprep.subr.bf16.mxu0 0
          %1399 = vmatpush1.bf16.msra.mxu0 %v1382
          %1400 = vmatprep.subr.bf16.mxu0 0
          %1401 = vmatpush1.bf16.msra.mxu0 %v1383
          %1402 = vmatprep.subr.bf16.mxu0 0
          %1403 = vmatpush1.bf16.msra.mxu0 %v1384
          %1404 = vmatprep.subr.bf16.mxu0 0
          %1405 = vmatpush1.bf16.msra.mxu0 %v1385
          %1406 = vmatprep.subr.bf16.mxu0 0
          %1407 = vmatpush1.bf16.msra.mxu0 %v1386
          %1408 = vmatprep.subr.bf16.mxu0 0
          %1409 = vmatpush1.bf16.msra.mxu0 %v1387
          %1410 = vmatprep.subr.bf16.mxu0 0
          %1411 = vmatpush1.bf16.msra.mxu0 %v1388
          %1412 = vmatprep.subr.bf16.mxu0 0
          %1413 = vmatpush1.bf16.msra.mxu0 %v1389
          %1414 = vmatprep.subr.bf16.mxu0 0
          %1415 = vmatpush1.bf16.msra.mxu0 0
          %1416 = vmatprep.subr.bf16.mxu0 0
          %1417 = vmatpush1.bf16.msra.mxu0 0
          %1418 = vmatprep.subr.bf16.mxu0 0
          %1419 = vmatpush1.bf16.msra.mxu0 0
          %1420 = vmatprep.subr.bf16.mxu0 0
          %1421 = vmatpush1.bf16.msra.mxu0 0
          %1422 = vmatprep.subr.bf16.mxu0 0
          %1423 = vmatpush1.bf16.msra.mxu0 0
          %1424 = vmatprep.subr.bf16.mxu0 0
          %1425 = vmatpush1.bf16.msra.mxu0 0
          %1426 = vmatprep.subr.bf16.mxu0 0
          %1427 = vmatpush1.bf16.msra.mxu0 0
          %1428 = vmatprep.subr.bf16.mxu0 0
          %1429 = vmatpush1.bf16.msra.mxu0 0
          %1430 = vmatprep.mubr.bf16.mxu0 0
          %1431 = vmatmul.mubr.bf16.gmra.mrb[0].mxu0 %v1318
          %v1432 = vpop.f32.mrb[0].mxu0
          %v1433 = vadd.f32 0.0, %v1432
          %v1434 = vpop.f32.mrb[0].mxu0
          %v1435 = vpop.f32.mrb[0].mxu0
          %v1436 = vadd.f32 0.0, %v1435
          %v1437 = vpop.f32.mrb[0].mxu0
          %1438 = vmatprep.mubr.bf16.mxu0 0
          %1439 = vmatmul.mubr.bf16.gmra.mrb[0].mxu0 %v1319
          %v1440 = vpop.f32.mrb[0].mxu0
          %v1441 = vadd.f32 0.0, %v1440
          %v1442 = vpop.f32.mrb[0].mxu0
          %v1443 = vpop.f32.mrb[0].mxu0
          %v1444 = vadd.f32 0.0, %v1443
          %v1445 = vpop.f32.mrb[0].mxu0
          %1446 = vmatprep.mubr.bf16.mxu0 0
          %1447 = vmatmul.mubr.bf16.gmra.mrb[0].mxu0 %v1320
          %v1448 = vpop.f32.mrb[0].mxu0
          %v1449 = vadd.f32 0.0, %v1448
          %v1450 = vpop.f32.mrb[0].mxu0
          %v1451 = vpop.f32.mrb[0].mxu0
          %v1452 = vadd.f32 0.0, %v1451
          %v1453 = vpop.f32.mrb[0].mxu0
          %1454 = vmatprep.mubr.bf16.mxu0 0
          %1455 = vmatmul.mubr.bf16.gmra.mrb[0].mxu0 %v1321
          %v1456 = vpop.f32.mrb[0].mxu0
          %v1457 = vadd.f32 0.0, %v1456
          %v1458 = vpop.f32.mrb[0].mxu0
          %v1459 = vpop.f32.mrb[0].mxu0
          %v1460 = vadd.f32 0.0, %v1459
          %v1461 = vpop.f32.mrb[0].mxu0
          %1462 = vmatprep.mubr.bf16.mxu0 0
          %1463 = vmatmul.mubr.bf16.gmra.mrb[0].mxu0 %v1322
          %v1464 = vpop.f32.mrb[0].mxu0
          %v1465 = vadd.f32 0.0, %v1464
          %v1466 = vpop.f32.mrb[0].mxu0
          %v1467 = vpop.f32.mrb[0].mxu0
          %v1468 = vadd.f32 0.0, %v1467
          %v1469 = vpop.f32.mrb[0].mxu0
          %1470 = vmatprep.mubr.bf16.mxu0 0
          %1471 = vmatmul.mubr.bf16.gmra.mrb[0].mxu0 %v1323
          %v1472 = vpop.f32.mrb[0].mxu0
          %v1473 = vadd.f32 0.0, %v1472
          %v1474 = vpop.f32.mrb[0].mxu0
          %v1475 = vpop.f32.mrb[0].mxu0
          %v1476 = vadd.f32 0.0, %v1475
          %v1477 = vpop.f32.mrb[0].mxu0
          %1478 = vmatprep.mubr.bf16.mxu0 0
          %1479 = vmatmul.mubr.bf16.gmra.mrb[0].mxu0 %v1324
          %v1480 = vpop.f32.mrb[0].mxu0
          %v1481 = vadd.f32 0.0, %v1480
          %v1482 = vpop.f32.mrb[0].mxu0
          %v1483 = vpop.f32.mrb[0].mxu0
          %v1484 = vadd.f32 0.0, %v1483
          %v1485 = vpop.f32.mrb[0].mxu0
          %1486 = vmatprep.mubr.bf16.mxu0 0
          %1487 = vmatmul.mubr.bf16.gmra.mrb[0].mxu0 %v1325
          %v1488 = vpop.f32.mrb[0].mxu0
          %v1489 = vadd.f32 0.0, %v1488
          %v1490 = vpop.f32.mrb[0].mxu0
          %v1491 = vpop.f32.mrb[0].mxu0
          %v1492 = vadd.f32 0.0, %v1491
          %v1493 = vpop.f32.mrb[0].mxu0
          %1494 = vmatprep.mubr.bf16.mxu0 0
          %1495 = vmatmul.mubr.bf16.gmra.mrb[0].mxu0 %v1326
          %v1496 = vpop.f32.mrb[0].mxu0
          %v1497 = vadd.f32 0.0, %v1496
          %v1498 = vpop.f32.mrb[0].mxu0
          %v1499 = vpop.f32.mrb[0].mxu0
          %v1500 = vadd.f32 0.0, %v1499
          %v1501 = vpop.f32.mrb[0].mxu0
          %1502 = vmatprep.mubr.bf16.mxu0 0
          %1503 = vmatmul.mubr.bf16.gmra.mrb[0].mxu0 %v1327
          %v1504 = vpop.f32.mrb[0].mxu0
          %v1505 = vadd.f32 0.0, %v1504
          %v1506 = vpop.f32.mrb[0].mxu0
          %v1507 = vpop.f32.mrb[0].mxu0
          %v1508 = vadd.f32 0.0, %v1507
          %v1509 = vpop.f32.mrb[0].mxu0
          %1510 = vmatprep.mubr.bf16.mxu0 0
          %1511 = vmatmul.mubr.bf16.gmra.mrb[0].mxu0 %v1328
          %v1512 = vpop.f32.mrb[0].mxu0
          %v1513 = vadd.f32 0.0, %v1512
          %v1514 = vpop.f32.mrb[0].mxu0
          %v1515 = vpop.f32.mrb[0].mxu0
          %v1516 = vadd.f32 0.0, %v1515
          %v1517 = vpop.f32.mrb[0].mxu0
          %1518 = vmatprep.mubr.bf16.mxu0 0
          %1519 = vmatmul.mubr.bf16.gmra.mrb[0].mxu0 %v1329
          %v1520 = vpop.f32.mrb[0].mxu0
          %v1521 = vadd.f32 0.0, %v1520
          %v1522 = vpop.f32.mrb[0].mxu0
          %v1523 = vpop.f32.mrb[0].mxu0
          %v1524 = vadd.f32 0.0, %v1523
          %v1525 = vpop.f32.mrb[0].mxu0
          %1526 = vmatprep.mubr.bf16.mxu0 0
          %1527 = vmatmul.mubr.bf16.gmra.mrb[0].mxu0 %v1330
          %v1528 = vpop.f32.mrb[0].mxu0
          %v1529 = vadd.f32 0.0, %v1528
          %v1530 = vpop.f32.mrb[0].mxu0
          %v1531 = vpop.f32.mrb[0].mxu0
          %v1532 = vadd.f32 0.0, %v1531
          %v1533 = vpop.f32.mrb[0].mxu0
          %1534 = vmatprep.mubr.bf16.mxu0 0
          %1535 = vmatmul.mubr.bf16.gmra.mrb[0].mxu0 %v1331
          %v1536 = vpop.f32.mrb[0].mxu0
          %v1537 = vadd.f32 0.0, %v1536
          %v1538 = vpop.f32.mrb[0].mxu0
          %v1539 = vpop.f32.mrb[0].mxu0
          %v1540 = vadd.f32 0.0, %v1539
          %v1541 = vpop.f32.mrb[0].mxu0
          %1542 = vmatprep.mubr.bf16.mxu0 0
          %1543 = vmatmul.mubr.bf16.gmra.mrb[0].mxu0 %v1332
          %v1544 = vpop.f32.mrb[0].mxu0
          %v1545 = vadd.f32 0.0, %v1544
          %v1546 = vpop.f32.mrb[0].mxu0
          %v1547 = vpop.f32.mrb[0].mxu0
          %v1548 = vadd.f32 0.0, %v1547
          %v1549 = vpop.f32.mrb[0].mxu0
          %1550 = vmatprep.mubr.bf16.mxu0 0
          %1551 = vmatmul.mubr.bf16.gmra.mrb[0].mxu0 %v1333
          %v1552 = vpop.f32.mrb[0].mxu0
          %v1553 = vadd.f32 0.0, %v1552
          %v1554 = vpop.f32.mrb[0].mxu0
          %v1555 = vpop.f32.mrb[0].mxu0
          %v1556 = vadd.f32 0.0, %v1555
          %v1557 = vpop.f32.mrb[0].mxu0
          %1558 = vdwg.mxu0
          %1560 = vset.pattern.permute.xlu0 0
          %1561 = vperm.xlu0 %1560, %v1254
          %v1562 = vpop.permute.xlu0 %1561
          %1565 = vset.pattern.permute.xlu0 0
          %1566 = vperm.xlu0 %1565, %v1255
          %v1567 = vpop.permute.xlu0 %1566
          %1570 = vset.pattern.permute.xlu0 0
          %1571 = vperm.xlu0 %1570, %v1256
          %v1572 = vpop.permute.xlu0 %1571
          %1575 = vset.pattern.permute.xlu0 0
          %1576 = vperm.xlu0 %1575, %v1257
          %v1577 = vpop.permute.xlu0 %1576
          %1580 = vset.pattern.permute.xlu0 0
          %1581 = vperm.xlu0 %1580, %v1258
          %v1582 = vpop.permute.xlu0 %1581
          %1585 = vset.pattern.permute.xlu0 0
          %1586 = vperm.xlu0 %1585, %v1259
          %v1587 = vpop.permute.xlu0 %1586
          %1590 = vset.pattern.permute.xlu0 0
          %1591 = vperm.xlu0 %1590, %v1260
          %v1592 = vpop.permute.xlu0 %1591
          %1595 = vset.pattern.permute.xlu0 0
          %1596 = vperm.xlu0 %1595, %v1261
          %v1597 = vpop.permute.xlu0 %1596
          %1600 = vset.pattern.permute.xlu0 0
          %1601 = vperm.xlu0 %1600, %v1262
          %v1602 = vpop.permute.xlu0 %1601
          %1605 = vset.pattern.permute.xlu0 0
          %1606 = vperm.xlu0 %1605, %v1263
          %v1607 = vpop.permute.xlu0 %1606
          %1610 = vset.pattern.permute.xlu0 0
          %1611 = vperm.xlu0 %1610, %v1264
          %v1612 = vpop.permute.xlu0 %1611
          %1615 = vset.pattern.permute.xlu0 0
          %1616 = vperm.xlu0 %1615, %v1265
          %v1617 = vpop.permute.xlu0 %1616
          %1620 = vset.pattern.permute.xlu0 0
          %1621 = vperm.xlu0 %1620, %v1266
          %v1622 = vpop.permute.xlu0 %1621
          %1625 = vset.pattern.permute.xlu0 0
          %1626 = vperm.xlu0 %1625, %v1267
          %v1627 = vpop.permute.xlu0 %1626
          %1630 = vset.pattern.permute.xlu0 0
          %1631 = vperm.xlu0 %1630, %v1268
          %v1632 = vpop.permute.xlu0 %1631
          %1635 = vset.pattern.permute.xlu0 0
          %1636 = vperm.xlu0 %1635, %v1269
          %v1637 = vpop.permute.xlu0 %1636
          %1640 = vset.pattern.permute.xlu0 0
          %1641 = vperm.xlu0 %1640, %v1270
          %v1642 = vpop.permute.xlu0 %1641
          %1645 = vset.pattern.permute.xlu0 0
          %1646 = vperm.xlu0 %1645, %v1271
          %v1647 = vpop.permute.xlu0 %1646
          %1650 = vset.pattern.permute.xlu0 0
          %1651 = vperm.xlu0 %1650, %v1272
          %v1652 = vpop.permute.xlu0 %1651
          %1655 = vset.pattern.permute.xlu0 0
          %1656 = vperm.xlu0 %1655, %v1273
          %v1657 = vpop.permute.xlu0 %1656
          %1660 = vset.pattern.permute.xlu0 0
          %1661 = vperm.xlu0 %1660, %v1274
          %v1662 = vpop.permute.xlu0 %1661
          %1665 = vset.pattern.permute.xlu0 0
          %1666 = vperm.xlu0 %1665, %v1275
          %v1667 = vpop.permute.xlu0 %1666
          %1670 = vset.pattern.permute.xlu0 0
          %1671 = vperm.xlu0 %1670, %v1276
          %v1672 = vpop.permute.xlu0 %1671
          %1675 = vset.pattern.permute.xlu0 0
          %1676 = vperm.xlu0 %1675, %v1277
          %v1677 = vpop.permute.xlu0 %1676
          %1680 = vset.pattern.permute.xlu0 0
          %1681 = vperm.xlu0 %1680, %v1278
          %v1682 = vpop.permute.xlu0 %1681
          %1685 = vset.pattern.permute.xlu0 0
          %1686 = vperm.xlu0 %1685, %v1279
          %v1687 = vpop.permute.xlu0 %1686
          %1690 = vset.pattern.permute.xlu0 0
          %1691 = vperm.xlu0 %1690, %v1280
          %v1692 = vpop.permute.xlu0 %1691
          %1695 = vset.pattern.permute.xlu0 0
          %1696 = vperm.xlu0 %1695, %v1281
          %v1697 = vpop.permute.xlu0 %1696
          %1700 = vset.pattern.permute.xlu0 0
          %1701 = vperm.xlu0 %1700, %v1282
          %v1702 = vpop.permute.xlu0 %1701
          %1705 = vset.pattern.permute.xlu0 0
          %1706 = vperm.xlu0 %1705, %v1283
          %v1707 = vpop.permute.xlu0 %1706
          %1710 = vset.pattern.permute.xlu0 0
          %1711 = vperm.xlu0 %1710, %v1284
          %v1712 = vpop.permute.xlu0 %1711
          %1715 = vset.pattern.permute.xlu0 0
          %1716 = vperm.xlu0 %1715, %v1285
          %v1717 = vpop.permute.xlu0 %1716
          %v1719 = vmul.f32 %v1433, %v1562
          %v1720 = vmul.f32 %v1436, %v1567
          %v1721 = vmul.f32 %v1441, %v1572
          %v1722 = vmul.f32 %v1444, %v1577
          %v1723 = vmul.f32 %v1449, %v1582
          %v1724 = vmul.f32 %v1452, %v1587
          %v1725 = vmul.f32 %v1457, %v1592
          %v1726 = vmul.f32 %v1460, %v1597
          %v1727 = vmul.f32 %v1465, %v1602
          %v1728 = vmul.f32 %v1468, %v1607
          %v1729 = vmul.f32 %v1473, %v1612
          %v1730 = vmul.f32 %v1476, %v1617
          %v1731 = vmul.f32 %v1481, %v1622
          %v1732 = vmul.f32 %v1484, %v1627
          %v1733 = vmul.f32 %v1489, %v1632
          %v1734 = vmul.f32 %v1492, %v1637
          %v1735 = vmul.f32 %v1497, %v1642
          %v1736 = vmul.f32 %v1500, %v1647
          %v1737 = vmul.f32 %v1505, %v1652
          %v1738 = vmul.f32 %v1508, %v1657
          %v1739 = vmul.f32 %v1513, %v1662
          %v1740 = vmul.f32 %v1516, %v1667
          %v1741 = vmul.f32 %v1521, %v1672
          %v1742 = vmul.f32 %v1524, %v1677
          %v1743 = vmul.f32 %v1529, %v1682
          %v1744 = vmul.f32 %v1532, %v1687
          %v1745 = vmul.f32 %v1537, %v1692
          %v1746 = vmul.f32 %v1540, %v1697
          %v1747 = vmul.f32 %v1545, %v1702
          %v1748 = vmul.f32 %v1548, %v1707
          %v1749 = vmul.f32 %v1553, %v1712
          %v1750 = vmul.f32 %v1556, %v1717
          %v1751 = vld [vmem:[%s5] sm:$0x1]
          %v1753 = vlaneseq
          %v1754 = vshrl.u32 %v1753, 7
          %v1755 = vsub.s32 0, %v1754
          %v1756 = vrot.slane %v1751, %v1755
          %v1758 = vadd.f32 %v1719, %v1756
          %v1759 = vadd.f32 %v1720, %v1756
          %v1760 = vadd.f32 %v1721, %v1756
          %v1761 = vadd.f32 %v1722, %v1756
          %v1762 = vadd.f32 %v1723, %v1756
          %v1763 = vadd.f32 %v1724, %v1756
          %v1764 = vadd.f32 %v1725, %v1756
          %v1765 = vadd.f32 %v1726, %v1756
          %v1766 = vadd.f32 %v1727, %v1756
          %v1767 = vadd.f32 %v1728, %v1756
          %v1768 = vadd.f32 %v1729, %v1756
          %v1769 = vadd.f32 %v1730, %v1756
          %v1770 = vadd.f32 %v1731, %v1756
          %v1771 = vadd.f32 %v1732, %v1756
          %v1772 = vadd.f32 %v1733, %v1756
          %v1773 = vadd.f32 %v1734, %v1756
          %v1774 = vadd.f32 %v1735, %v1756
          %v1775 = vadd.f32 %v1736, %v1756
          %v1776 = vadd.f32 %v1737, %v1756
          %v1777 = vadd.f32 %v1738, %v1756
          %v1778 = vadd.f32 %v1739, %v1756
          %v1779 = vadd.f32 %v1740, %v1756
          %v1780 = vadd.f32 %v1741, %v1756
          %v1781 = vadd.f32 %v1742, %v1756
          %v1782 = vadd.f32 %v1743, %v1756
          %v1783 = vadd.f32 %v1744, %v1756
          %v1784 = vadd.f32 %v1745, %v1756
          %v1785 = vadd.f32 %v1746, %v1756
          %v1786 = vadd.f32 %v1747, %v1756
          %v1787 = vadd.f32 %v1748, %v1756
          %v1788 = vadd.f32 %v1749, %v1756
          %v1789 = vadd.f32 %v1750, %v1756
          %1790 = vst [vmem:[%s314] sm:$0xff] %v1758
          %1791 = vst [vmem:[%s314 + $0x8] sm:$0xff] %v1759
          %1792 = vst [vmem:[%s314 + $0x10] sm:$0xff] %v1760
          %1793 = vst [vmem:[%s314 + $0x18] sm:$0xff] %v1761
          %1794 = vst [vmem:[%s314 + $0x20] sm:$0xff] %v1762
          %1795 = vst [vmem:[%s314 + $0x28] sm:$0xff] %v1763
          %1796 = vst [vmem:[%s314 + $0x30] sm:$0xff] %v1764
          %1797 = vst [vmem:[%s314 + $0x38] sm:$0xff] %v1765
          %1798 = vst [vmem:[%s314 + $0x40] sm:$0xff] %v1766
          %1799 = vst [vmem:[%s314 + $0x48] sm:$0xff] %v1767
          %1800 = vst [vmem:[%s314 + $0x50] sm:$0xff] %v1768
          %1801 = vst [vmem:[%s314 + $0x58] sm:$0xff] %v1769
          %1802 = vst [vmem:[%s314 + $0x60] sm:$0xff] %v1770
          %1803 = vst [vmem:[%s314 + $0x68] sm:$0xff] %v1771
          %1804 = vst [vmem:[%s314 + $0x70] sm:$0xff] %v1772
          %1805 = vst [vmem:[%s314 + $0x78] sm:$0xff] %v1773
          %1806 = vst [vmem:[%s314 + $0x80] sm:$0xff] %v1774
          %1807 = vst [vmem:[%s314 + $0x88] sm:$0xff] %v1775
          %1808 = vst [vmem:[%s314 + $0x90] sm:$0xff] %v1776
          %1809 = vst [vmem:[%s314 + $0x98] sm:$0xff] %v1777
          %1810 = vst [vmem:[%s314 + $0xa0] sm:$0xff] %v1778
          %1811 = vst [vmem:[%s314 + $0xa8] sm:$0xff] %v1779
          %1812 = vst [vmem:[%s314 + $0xb0] sm:$0xff] %v1780
          %1813 = vst [vmem:[%s314 + $0xb8] sm:$0xff] %v1781
          %1814 = vst [vmem:[%s314 + $0xc0] sm:$0xff] %v1782
          %1815 = vst [vmem:[%s314 + $0xc8] sm:$0xff] %v1783
          %1816 = vst [vmem:[%s314 + $0xd0] sm:$0xff] %v1784
          %1817 = vst [vmem:[%s314 + $0xd8] sm:$0xff] %v1785
          %1818 = vst [vmem:[%s314 + $0xe0] sm:$0xff] %v1786
          %1819 = vst [vmem:[%s314 + $0xe8] sm:$0xff] %v1787
          %1820 = vst [vmem:[%s314 + $0xf0] sm:$0xff] %v1788
          %1821 = vst [vmem:[%s314 + $0xf8] sm:$0xff] %v1789
        $region60: #{tpu_custom_call.1} parent=35 // pred_fallthru
          _
        %s1822 = sand.u32 %s162, 1
        %s1823 = scalar_lea.sflag [#allocation9], %s1822
        %s1824 = sand.u32 %s162, 1
        %s1825 = smul.addr %s1824, 256
        %s1826 = scalar_lea.vmem [#allocation13], %s1825
        // Predicated region
        $region61: #{tpu_custom_call.1} parent=35 // pred_check
          %p1827 = pneg %p172
        $region62: #{tpu_custom_call.1} parent=35 // pred_check_branch
          %1829 = sbr.rel (%p1827) target = $region64
        $region63: #{tpu_custom_call.1} parent=35 // pred_region
          %s1830 = smul.u32 32, %s38
          %s1832 = ssub.s32 4096, 4096
          %1833 = vsyncadd %s1823, %s1832
          %s1834 = smul.addr %s1830, 128
          %s1835 = scalar_lea.hbm %s6, %s1834
          %s1836 = sshll.u32 %s1826, 4
          %s1837 = int_to_ptr.vmem [resolvable:$true] %s1836
          %1842 = dma.vmem_to_hbm [thread:$0]  %s1837, 4096, %s1835, %s1823, 128, 128, 8
        $region64: #{tpu_custom_call.1} parent=35 // pred_fallthru
          _
      $region36: #{tpu_custom_call.1} parent=5 // pred_fallthru
        _
      %p1843 = scmp.le.s32.totalorder 2, %s29
      // Predicated region
      $region65: #{tpu_custom_call.1} parent=5 // pred_check
        %p1844 = pneg %p1843
      $region66: #{tpu_custom_call.1} parent=5 // pred_check_branch
        %1846 = sbr.rel (%p1844) target = $region68
      $region67: #{tpu_custom_call.1} parent=5 // pred_region
        %s1847 = ssub.s32 %s29, 2
        // Predicated region
        $region69: #{tpu_custom_call.1} parent=67 // pred_check
          %p1848 = pneg %p178
        $region70: #{tpu_custom_call.1} parent=67 // pred_check_branch
          %1850 = sbr.rel (%p1848) target = $region72
        $region71: #{tpu_custom_call.1} parent=67 // pred_region
          %s1851 = sand.u32 %s163, 1
          %s1852 = scalar_lea.sflag [#allocation9], %s1851
          %s1853 = sand.u32 %s163, 1
          %s1854 = smul.addr %s1853, 256
          %s1855 = scalar_lea.vmem [#allocation13], %s1854
          %1856 = dma.done %s1852, 4096
        $region72: #{tpu_custom_call.1} parent=67 // pred_fallthru
          _
      $region68: #{tpu_custom_call.1} parent=5 // pred_fallthru
        _
    $region6: #{tpu_custom_call.1} parent=1 // loop_footer
      %s33 = sadd.s32 1, %s29
    $region7: #{tpu_custom_call.1} parent=1 // loop_footer_branch
      %28 = sbr.rel target = $region3
    $region8: #{tpu_custom_call.1} parent=1 // loop_exit
      _
    %1857 = vsyncpa [#allocation8], 1
    %s1858 = scalar_lea.sflag [#allocation8], 1
    %1859 = vsyncpa %s1858, 1
    %1860 = vsyncpa [#allocation11], 1
    %s1861 = scalar_lea.sflag [#allocation11], 1
    %1862 = vsyncpa %s1861, 1
    %1863 = vsyncpa [#allocation9], 1
    %s1864 = scalar_lea.sflag [#allocation9], 1
    %1865 = vsyncpa %s1864, 1

</llo_original>
